<compile_context>
chip_gen: v6e
topology: v6e:2x2x1
jax: 0.10.0
libtpu: 0.0.40
codegen_flags: <defaults>
</compile_context>

<pallas_src>
import jax
import jax.numpy as jnp
from jax.experimental import pallas as pl
from jax.experimental.pallas import tpu as pltpu

AGENT_NUM = 4
H1, H2, H3 = 128, 64, 128


def _mlp_softmax_kernel(x_ref,
                        w1_ref, b1_ref,
                        w2_ref, b2_ref,
                        w3_ref, b3_ref,
                        w4_ref, b4_ref,
                        o_ref):
    # ---- Layer 1: (TB, 4) @ (4, 128) as 4 VPU rank-1 updates (K=4) ----
    x = x_ref[...]                                  # (TB, 4)   f32
    w1 = w1_ref[...]                                # (4, 128)  f32
    h = x[:, 0:1] * w1[0:1, :]
    h = h + x[:, 1:2] * w1[1:2, :]
    h = h + x[:, 2:3] * w1[2:3, :]
    h = h + x[:, 3:4] * w1[3:4, :]
    h = jnp.maximum(h + b1_ref[...], 0.0)           # (TB, 128) f32

    # ---- Layer 2: bf16 MXU matmul, f32 accumulation ----
    h = jnp.dot(h.astype(jnp.bfloat16), w2_ref[...],
                preferred_element_type=jnp.float32)
    h = jnp.maximum(h + b2_ref[...], 0.0)           # (TB, 64)  f32

    # ---- Layer 3 ----
    h = jnp.dot(h.astype(jnp.bfloat16), w3_ref[...],
                preferred_element_type=jnp.float32)
    h = jnp.maximum(h + b3_ref[...], 0.0)           # (TB, 128) f32

    # ---- Layer 4 ----
    logits = jnp.dot(h.astype(jnp.bfloat16), w4_ref[...],
                     preferred_element_type=jnp.float32)
    logits = logits + b4_ref[...]                   # (TB, 4)   f32

    # ---- Softmax over the last axis (dim=-1 for 2-D input), exact f32 ----
    m = jnp.max(logits, axis=-1, keepdims=True)
    e = jnp.exp(logits - m)
    s = jnp.sum(e, axis=-1, keepdims=True)
    o_ref[...] = (e / s).astype(o_ref.dtype)        # exact divide -> rows sum to ~1


def example_payment_net_forward(state, params, *, tb=128):
    """state: (B, AGENT_NUM) f32. params: dict of f32 weights/biases."""
    B = state.shape[0]
    # Layer-1 weights stay f32 (VPU path); MXU matmul weights go to bf16.
    w1 = params["w1"].astype(jnp.float32)
    b1 = params["b1"].astype(jnp.float32)
    w2 = params["w2"].astype(jnp.bfloat16)
    b2 = params["b2"].astype(jnp.float32)
    w3 = params["w3"].astype(jnp.bfloat16)
    b3 = params["b3"].astype(jnp.float32)
    w4 = params["w4"].astype(jnp.bfloat16)
    b4 = params["b4"].astype(jnp.float32)

    # Batch tile: multiple of 8 (f32 sublane). If B is smaller than the tile,
    # use a block equal to the full batch (legal regardless of divisibility).
    tb = min(tb, B)
    grid = (pl.cdiv(B, tb),)

    x_spec = pl.BlockSpec((tb, AGENT_NUM), lambda i: (i, 0))
    o_spec = pl.BlockSpec((tb, AGENT_NUM), lambda i: (i, 0))
    const = lambda shape: pl.BlockSpec(shape, lambda i: tuple(0 for _ in shape))

    flops = 2 * B * (AGENT_NUM * H1 + H1 * H2 + H2 * H3 + H3 * AGENT_NUM)
    transcendentals = 4 * B  # exp (4/row)
    bytes_accessed = (
        2 * B * AGENT_NUM * 4                     # state in + probs out (f32)
        + (w1.size + b1.size + b2.size + b3.size + b4.size) * 4
        + (w2.size + w3.size + w4.size) * 2)      # bf16 weights

    return pl.pallas_call(
        _mlp_softmax_kernel,
        out_shape=jax.ShapeDtypeStruct((B, AGENT_NUM), jnp.float32),
        grid=grid,
        in_specs=[
            x_spec,
            const(w1.shape), const(b1.shape),
            const(w2.shape), const(b2.shape),
            const(w3.shape), const(b3.shape),
            const(w4.shape), const(b4.shape),
        ],
        out_specs=o_spec,
        compiler_params=pltpu.CompilerParams(
            dimension_semantics=("parallel",)),
        cost_estimate=pl.CostEstimate(
            flops=flops,
            transcendentals=transcendentals,
            bytes_accessed=bytes_accessed),
    )(state, w1, b1, w2, b2, w3, b3, w4, b4)


def _init_linear(key, fan_in, fan_out):
    """Deterministic init mimicking PyTorch nn.Linear default (uniform +-1/sqrt(fan_in))."""
    kw, kb = jax.random.split(key)
    bound = 1.0 / jnp.sqrt(float(fan_in))
    # Stored as (in, out) so the kernel computes x @ W.
    w = jax.random.uniform(kw, (fan_in, fan_out), jnp.float32, -bound, bound)
    b = jax.random.uniform(kb, (1, fan_out), jnp.float32, -bound, bound)
    return w, b


def make_params(key):
    k1, k2, k3, k4 = jax.random.split(key, 4)
    w1, b1 = _init_linear(k1, AGENT_NUM, H1)
    w2, b2 = _init_linear(k2, H1, H2)
    w3, b3 = _init_linear(k3, H2, H3)
    w4, b4 = _init_linear(k4, H3, AGENT_NUM)
    return dict(w1=w1, b1=b1, w2=w2, b2=b2, w3=w3, b3=b3, w4=w4, b4=b4)


def reference_forward(state, params):
    """Pure-JAX f32 reference for correctness checking."""
    h = jnp.maximum(state @ params["w1"] + params["b1"], 0.0)
    h = jnp.maximum(h @ params["w2"] + params["b2"], 0.0)
    h = jnp.maximum(h @ params["w3"] + params["b3"], 0.0)
    logits = h @ params["w4"] + params["b4"]
    return jax.nn.softmax(logits, axis=-1)


if __name__ == "__main__":
    key = jax.random.PRNGKey(0)
    k_params, k_state = jax.random.split(key)

    params = make_params(k_params)
    # Batch of "states" (valuation vectors). 256 rows with TB=128 exercises a
    # 2-step batch grid while staying small.
    batch = 256
    state = jax.random.normal(k_state, (batch, AGENT_NUM), jnp.float32)

    out = example_payment_net_forward(state, params, tb=128)
    out = jax.block_until_ready(out)

    ref = reference_forward(state, params)
    assert out.shape == (batch, AGENT_NUM)
    # bf16 matmuls with f32 accumulation -> relaxed tolerance vs f32 reference.
    assert jnp.allclose(out, ref, atol=3e-2, rtol=3e-2), "mismatch vs JAX reference"
    # Exact f32 softmax normalization -> rows sum to 1 within f32 rounding.
    assert jnp.allclose(jnp.sum(out, axis=-1), 1.0, atol=1e-5)

    print("KERNEL_OK")
</pallas_src>

<mosaic_0001>
module attributes {stable_mosaic.version = 11 : i64} {
  func.func @_mlp_softmax_kernel(%arg0: i32, %arg1: memref<128x4xf32, #tpu.memory_space<vmem>>, %arg2: memref<4x128xf32, #tpu.memory_space<vmem>>, %arg3: memref<1x128xf32, #tpu.memory_space<vmem>>, %arg4: memref<128x64xbf16, #tpu.memory_space<vmem>>, %arg5: memref<1x64xf32, #tpu.memory_space<vmem>>, %arg6: memref<64x128xbf16, #tpu.memory_space<vmem>>, %arg7: memref<1x128xf32, #tpu.memory_space<vmem>>, %arg8: memref<128x4xbf16, #tpu.memory_space<vmem>>, %arg9: memref<1x4xf32, #tpu.memory_space<vmem>>, %arg10: memref<128x4xf32, #tpu.memory_space<vmem>>) attributes {dimension_semantics = [#tpu.dimension_semantics<parallel>], iteration_bounds = array<i64: 2>, scalar_prefetch = 0 : i64, scratch_operands = 0 : i64, tpu.core_type = #tpu.core_type<tc>, window_params = [{transform_indices = @transform_0, window_bounds = array<i64: 128, 4>}, {pipeline_mode = #tpu.pipeline_mode<synchronous>, transform_indices = @transform_1, window_bounds = array<i64: 4, 128>}, {pipeline_mode = #tpu.pipeline_mode<synchronous>, transform_indices = @transform_2, window_bounds = array<i64: 1, 128>}, {pipeline_mode = #tpu.pipeline_mode<synchronous>, transform_indices = @transform_3, window_bounds = array<i64: 128, 64>}, {pipeline_mode = #tpu.pipeline_mode<synchronous>, transform_indices = @transform_4, window_bounds = array<i64: 1, 64>}, {pipeline_mode = #tpu.pipeline_mode<synchronous>, transform_indices = @transform_5, window_bounds = array<i64: 64, 128>}, {pipeline_mode = #tpu.pipeline_mode<synchronous>, transform_indices = @transform_6, window_bounds = array<i64: 1, 128>}, {pipeline_mode = #tpu.pipeline_mode<synchronous>, transform_indices = @transform_7, window_bounds = array<i64: 128, 4>}, {pipeline_mode = #tpu.pipeline_mode<synchronous>, transform_indices = @transform_8, window_bounds = array<i64: 1, 4>}, {transform_indices = @transform_9, window_bounds = array<i64: 128, 4>}]} {
    %c0 = arith.constant 0 : index
    %c0_0 = arith.constant 0 : index
    %0 = vector.load %arg1[%c0, %c0_0] : memref<128x4xf32, #tpu.memory_space<vmem>>, vector<128x4xf32>
    %c0_1 = arith.constant 0 : index
    %c0_2 = arith.constant 0 : index
    %1 = vector.load %arg2[%c0_1, %c0_2] : memref<4x128xf32, #tpu.memory_space<vmem>>, vector<4x128xf32>
    %2 = vector.extract_strided_slice %0 {offsets = [0, 0], sizes = [128, 1], strides = [1, 1]} : vector<128x4xf32> to vector<128x1xf32>
    %3 = vector.extract_strided_slice %1 {offsets = [0, 0], sizes = [1, 128], strides = [1, 1]} : vector<4x128xf32> to vector<1x128xf32>
    %4 = vector.broadcast %2 : vector<128x1xf32> to vector<128x128xf32>
    %5 = vector.broadcast %3 : vector<1x128xf32> to vector<128x128xf32>
    %6 = arith.mulf %4, %5 : vector<128x128xf32>
    %7 = vector.extract_strided_slice %0 {offsets = [0, 1], sizes = [128, 1], strides = [1, 1]} : vector<128x4xf32> to vector<128x1xf32>
    %8 = vector.extract_strided_slice %1 {offsets = [1, 0], sizes = [1, 128], strides = [1, 1]} : vector<4x128xf32> to vector<1x128xf32>
    %9 = vector.broadcast %7 : vector<128x1xf32> to vector<128x128xf32>
    %10 = vector.broadcast %8 : vector<1x128xf32> to vector<128x128xf32>
    %11 = arith.mulf %9, %10 : vector<128x128xf32>
    %12 = arith.addf %6, %11 : vector<128x128xf32>
    %13 = vector.extract_strided_slice %0 {offsets = [0, 2], sizes = [128, 1], strides = [1, 1]} : vector<128x4xf32> to vector<128x1xf32>
    %14 = vector.extract_strided_slice %1 {offsets = [2, 0], sizes = [1, 128], strides = [1, 1]} : vector<4x128xf32> to vector<1x128xf32>
    %15 = vector.broadcast %13 : vector<128x1xf32> to vector<128x128xf32>
    %16 = vector.broadcast %14 : vector<1x128xf32> to vector<128x128xf32>
    %17 = arith.mulf %15, %16 : vector<128x128xf32>
    %18 = arith.addf %12, %17 : vector<128x128xf32>
    %19 = vector.extract_strided_slice %0 {offsets = [0, 3], sizes = [128, 1], strides = [1, 1]} : vector<128x4xf32> to vector<128x1xf32>
    %20 = vector.extract_strided_slice %1 {offsets = [3, 0], sizes = [1, 128], strides = [1, 1]} : vector<4x128xf32> to vector<1x128xf32>
    %21 = vector.broadcast %19 : vector<128x1xf32> to vector<128x128xf32>
    %22 = vector.broadcast %20 : vector<1x128xf32> to vector<128x128xf32>
    %23 = arith.mulf %21, %22 : vector<128x128xf32>
    %24 = arith.addf %18, %23 : vector<128x128xf32>
    %c0_3 = arith.constant 0 : index
    %c0_4 = arith.constant 0 : index
    %25 = vector.load %arg3[%c0_3, %c0_4] : memref<1x128xf32, #tpu.memory_space<vmem>>, vector<1x128xf32>
    %26 = vector.broadcast %25 : vector<1x128xf32> to vector<128x128xf32>
    %27 = arith.addf %24, %26 : vector<128x128xf32>
    %cst = arith.constant 0.000000e+00 : f32
    %28 = vector.broadcast %cst : f32 to vector<128x128xf32>
    %29 = arith.maximumf %27, %28 : vector<128x128xf32>
    %30 = arith.truncf %29 : vector<128x128xf32> to vector<128x128xbf16>
    %c0_5 = arith.constant 0 : index
    %c0_6 = arith.constant 0 : index
    %31 = vector.load %arg4[%c0_5, %c0_6] : memref<128x64xbf16, #tpu.memory_space<vmem>>, vector<128x64xbf16>
    %cst_7 = arith.constant dense<0.000000e+00> : vector<128x64xf32>
    %32 = tpu.matmul %30, %31, %cst_7 {dimension_numbers = #tpu.dot_dimension_numbers<[1], [0], [0], [1], [0, 0, 1, 1], [], []>} : vector<128x128xbf16>, vector<128x64xbf16>, vector<128x64xf32> -> vector<128x64xf32>
    %c0_8 = arith.constant 0 : index
    %c0_9 = arith.constant 0 : index
    %33 = vector.load %arg5[%c0_8, %c0_9] : memref<1x64xf32, #tpu.memory_space<vmem>>, vector<1x64xf32>
    %34 = vector.broadcast %33 : vector<1x64xf32> to vector<128x64xf32>
    %35 = arith.addf %32, %34 : vector<128x64xf32>
    %cst_10 = arith.constant 0.000000e+00 : f32
    %36 = vector.broadcast %cst_10 : f32 to vector<128x64xf32>
    %37 = arith.maximumf %35, %36 : vector<128x64xf32>
    %38 = arith.truncf %37 : vector<128x64xf32> to vector<128x64xbf16>
    %c0_11 = arith.constant 0 : index
    %c0_12 = arith.constant 0 : index
    %39 = vector.load %arg6[%c0_11, %c0_12] : memref<64x128xbf16, #tpu.memory_space<vmem>>, vector<64x128xbf16>
    %cst_13 = arith.constant dense<0.000000e+00> : vector<128x128xf32>
    %40 = tpu.matmul %38, %39, %cst_13 {dimension_numbers = #tpu.dot_dimension_numbers<[1], [0], [0], [1], [0, 0, 1, 1], [], []>} : vector<128x64xbf16>, vector<64x128xbf16>, vector<128x128xf32> -> vector<128x128xf32>
    %c0_14 = arith.constant 0 : index
    %c0_15 = arith.constant 0 : index
    %41 = vector.load %arg7[%c0_14, %c0_15] : memref<1x128xf32, #tpu.memory_space<vmem>>, vector<1x128xf32>
    %42 = vector.broadcast %41 : vector<1x128xf32> to vector<128x128xf32>
    %43 = arith.addf %40, %42 : vector<128x128xf32>
    %cst_16 = arith.constant 0.000000e+00 : f32
    %44 = vector.broadcast %cst_16 : f32 to vector<128x128xf32>
    %45 = arith.maximumf %43, %44 : vector<128x128xf32>
    %46 = arith.truncf %45 : vector<128x128xf32> to vector<128x128xbf16>
    %c0_17 = arith.constant 0 : index
    %c0_18 = arith.constant 0 : index
    %47 = vector.load %arg8[%c0_17, %c0_18] : memref<128x4xbf16, #tpu.memory_space<vmem>>, vector<128x4xbf16>
    %cst_19 = arith.constant dense<0.000000e+00> : vector<128x4xf32>
    %48 = tpu.matmul %46, %47, %cst_19 {dimension_numbers = #tpu.dot_dimension_numbers<[1], [0], [0], [1], [0, 0, 1, 1], [], []>} : vector<128x128xbf16>, vector<128x4xbf16>, vector<128x4xf32> -> vector<128x4xf32>
    %c0_20 = arith.constant 0 : index
    %c0_21 = arith.constant 0 : index
    %49 = vector.load %arg9[%c0_20, %c0_21] : memref<1x4xf32, #tpu.memory_space<vmem>>, vector<1x4xf32>
    %50 = vector.broadcast %49 : vector<1x4xf32> to vector<128x4xf32>
    %51 = arith.addf %48, %50 : vector<128x4xf32>
    %cst_22 = arith.constant dense<0xFF800000> : vector<128xf32>
    %52 = vector.multi_reduction <maximumf>, %51, %cst_22 [1] : vector<128x4xf32> to vector<128xf32>
    %53 = vector.shape_cast %52 : vector<128xf32> to vector<128x1xf32>
    %54 = vector.broadcast %53 : vector<128x1xf32> to vector<128x4xf32>
    %55 = arith.subf %51, %54 : vector<128x4xf32>
    %56 = math.exp %55 : vector<128x4xf32>
    %cst_23 = arith.constant dense<0.000000e+00> : vector<128xf32>
    %57 = vector.multi_reduction <add>, %56, %cst_23 [1] : vector<128x4xf32> to vector<128xf32>
    %58 = vector.shape_cast %57 : vector<128xf32> to vector<128x1xf32>
    %59 = vector.broadcast %58 : vector<128x1xf32> to vector<128x4xf32>
    %60 = arith.divf %56, %59 : vector<128x4xf32>
    %c0_24 = arith.constant 0 : index
    %c0_25 = arith.constant 0 : index
    %61 = vector.load %arg10[%c0_24, %c0_25] : memref<128x4xf32, #tpu.memory_space<vmem>>, vector<128x4xf32>
    tpu.vector_store %arg10[%c0_24, %c0_25], %60 {strides = array<i32>} : memref<128x4xf32, #tpu.memory_space<vmem>>, vector<128x4xf32>,
    return
  }
  func.func @transform_0(%arg0: i32) -> (i32, i32) {
    %c0_i32 = arith.constant 0 : i32
    %c0_i32_0 = arith.constant 0 : i32
    return %arg0, %c0_i32 : i32, i32
  }
  func.func @transform_1(%arg0: i32) -> (i32, i32) {
    %c0_i32 = arith.constant 0 : i32
    %c0_i32_0 = arith.constant 0 : i32
    %c0_i32_1 = arith.constant 0 : i32
    return %c0_i32, %c0_i32_0 : i32, i32
  }
  func.func @transform_2(%arg0: i32) -> (i32, i32) {
    %c0_i32 = arith.constant 0 : i32
    %c0_i32_0 = arith.constant 0 : i32
    %c0_i32_1 = arith.constant 0 : i32
    return %c0_i32, %c0_i32_0 : i32, i32
  }
  func.func @transform_3(%arg0: i32) -> (i32, i32) {
    %c0_i32 = arith.constant 0 : i32
    %c0_i32_0 = arith.constant 0 : i32
    %c0_i32_1 = arith.constant 0 : i32
    return %c0_i32, %c0_i32_0 : i32, i32
  }
  func.func @transform_4(%arg0: i32) -> (i32, i32) {
    %c0_i32 = arith.constant 0 : i32
    %c0_i32_0 = arith.constant 0 : i32
    %c0_i32_1 = arith.constant 0 : i32
    return %c0_i32, %c0_i32_0 : i32, i32
  }
  func.func @transform_5(%arg0: i32) -> (i32, i32) {
    %c0_i32 = arith.constant 0 : i32
    %c0_i32_0 = arith.constant 0 : i32
    %c0_i32_1 = arith.constant 0 : i32
    return %c0_i32, %c0_i32_0 : i32, i32
  }
  func.func @transform_6(%arg0: i32) -> (i32, i32) {
    %c0_i32 = arith.constant 0 : i32
    %c0_i32_0 = arith.constant 0 : i32
    %c0_i32_1 = arith.constant 0 : i32
    return %c0_i32, %c0_i32_0 : i32, i32
  }
  func.func @transform_7(%arg0: i32) -> (i32, i32) {
    %c0_i32 = arith.constant 0 : i32
    %c0_i32_0 = arith.constant 0 : i32
    %c0_i32_1 = arith.constant 0 : i32
    return %c0_i32, %c0_i32_0 : i32, i32
  }
  func.func @transform_8(%arg0: i32) -> (i32, i32) {
    %c0_i32 = arith.constant 0 : i32
    %c0_i32_0 = arith.constant 0 : i32
    %c0_i32_1 = arith.constant 0 : i32
    return %c0_i32, %c0_i32_0 : i32, i32
  }
  func.func @transform_9(%arg0: i32) -> (i32, i32) {
    %c0_i32 = arith.constant 0 : i32
    %c0_i32_0 = arith.constant 0 : i32
    return %arg0, %c0_i32 : i32, i32
  }
}

</mosaic_0001>

<llo_original>
// kernel: tpu_custom_call.1
$region0: #{tpu_custom_call.1}
  #allocation0 [shape = 'u32[]', space=smem, size = 0x4, offset = 0x4, fixed_abs, tag = 'smem constant byte address 0x4 - core index']
  #allocation1 [shape = 'u32[144,128]{1,0:T(1,128)}', space=vmem, size = 0x12000, scoped, tag = 'internal scratch']
  %s0 = inlined_call_operand.vmem [shape: f32[256,4], index: 0, kind: input, shape index: {}]
  %s1 = inlined_call_operand.vmem [shape: f32[4,128], index: 1, kind: input, shape index: {}]
  %s2 = inlined_call_operand.vmem [shape: f32[1,128], index: 2, kind: input, shape index: {}]
  %s3 = inlined_call_operand.vmem [shape: bf16[128,64], index: 3, kind: input, shape index: {}]
  %s4 = inlined_call_operand.vmem [shape: f32[1,64], index: 4, kind: input, shape index: {}]
  %s5 = inlined_call_operand.vmem [shape: bf16[64,128], index: 5, kind: input, shape index: {}]
  %s6 = inlined_call_operand.vmem [shape: f32[1,128], index: 6, kind: input, shape index: {}]
  %s7 = inlined_call_operand.vmem [shape: bf16[128,4], index: 7, kind: input, shape index: {}]
  %s8 = inlined_call_operand.vmem [shape: f32[1,4], index: 8, kind: input, shape index: {}]
  %s9 = inlined_call_operand.vmem [shape: f32[256,4], index: 9, kind: output, shape index: {}]
  %s10 = sld [smem:[#allocation0]]
  $region69: #{tpu_custom_call.1} parent=0
    _
  %s12 = ssub.s32 1, %s10
  %s13 = scalar_select 0, %s12, %s10
  loop: start=0, step=1, limit=4
  $region2: #{tpu_custom_call.1} parent=0 // loop_pre_header
    _
  $region3: #{tpu_custom_call.1} parent=0 // loop_header
    %s15 = sphi 0, %s19
    %p16 = scmp.ge.s32.totalorder %s15, 4
    %s25 = sphi 0, %s27
    %s28 = sphi 0, %s25
    %s29 = sphi 0, %s28
    %s45 = sphi 0, %s29
    %s49 = sphi 0, %s49
    %s51 = sphi 0, %s49
    %s52 = sphi 0, %s51
    %s66 = sphi 0, %s52
    %s70 = sphi 0, %s70
    %s72 = sphi 0, %s70
    %s73 = sphi 0, %s72
    %s87 = sphi 0, %s73
    %s91 = sphi 0, %s91
    %s93 = sphi 0, %s91
    %s94 = sphi 0, %s93
    %s108 = sphi 0, %s94
    %s112 = sphi 0, %s112
    %s114 = sphi 0, %s112
    %s115 = sphi 0, %s114
    %s129 = sphi 0, %s115
    %s133 = sphi 0, %s133
    %s135 = sphi 0, %s133
    %s136 = sphi 0, %s135
    %s150 = sphi 0, %s136
    %s154 = sphi 0, %s154
    %s156 = sphi 0, %s154
    %s157 = sphi 0, %s156
    %s171 = sphi 0, %s157
    %s175 = sphi 0, %s175
    %s177 = sphi 0, %s175
    %s178 = sphi 0, %s177
    %s192 = sphi 0, %s178
    %s196 = sphi 0, %s196
    %s198 = sphi 0, %s196
    %s199 = sphi 0, %s198
    %s213 = sphi 0, %s199
    %s219 = sphi 0, %s221
    %s222 = sphi 0, %s219
    %s223 = sphi 0, %s222
    %s239 = sphi 0, %s223
  $region4: #{tpu_custom_call.1} parent=0 // loop_header_branch
    %18 = sbr.rel (%p16) target = $region8
  $region5: #{tpu_custom_call.1} parent=0 // loop_body
    %s20 = ssub.s32 %s15, 1
    %s21 = ssub.s32 %s15, 2
    %s22 = sadd.s32 %s15, 1
    %s23 = ssub.s32 %s15, %s22
    %p24 = scmp.eq.s32.totalorder %s23, 0
    %s26 = sadd.s32 %s25, 1
    %s27 = scalar_select %p24, %s25, %s26
    %p30 = pneg %p24
    %p31 = scmp.eq.s32.totalorder %s15, 1
    %p32 = por %p30, %p31
    %p33 = scmp.ne.s32.totalorder %s25, %s28
    %p34 = scmp.eq.s32.totalorder %s15, 0
    %p35 = por %p33, %p34
    %p36 = scmp.ne.s32.totalorder %s25, %s28
    %p37 = scmp.eq.s32.totalorder %s20, 1
    %p38 = por %p36, %p37
    %p39 = scmp.ne.s32.totalorder %s28, %s29
    %p40 = scmp.eq.s32.totalorder %s20, 0
    %p41 = por %p39, %p40
    %p42 = scmp.ne.s32.totalorder %s28, %s29
    %p43 = scmp.eq.s32.totalorder %s21, 1
    %p44 = por %p42, %p43
    %p46 = scmp.ne.s32.totalorder %s29, %s45
    %p47 = scmp.eq.s32.totalorder %s21, 0
    %p48 = por %p46, %p47
    %s50 = sadd.s32 %s49, 1
    %p53 = scmp.eq.s32.totalorder %s15, 1
    %p54 = scmp.ne.s32.totalorder %s49, %s51
    %p55 = scmp.eq.s32.totalorder %s15, 0
    %p56 = por %p54, %p55
    %p57 = scmp.ne.s32.totalorder %s49, %s51
    %p58 = scmp.eq.s32.totalorder %s20, 1
    %p59 = por %p57, %p58
    %p60 = scmp.ne.s32.totalorder %s51, %s52
    %p61 = scmp.eq.s32.totalorder %s20, 0
    %p62 = por %p60, %p61
    %p63 = scmp.ne.s32.totalorder %s51, %s52
    %p64 = scmp.eq.s32.totalorder %s21, 1
    %p65 = por %p63, %p64
    %p67 = scmp.ne.s32.totalorder %s52, %s66
    %p68 = scmp.eq.s32.totalorder %s21, 0
    %p69 = por %p67, %p68
    %s71 = sadd.s32 %s70, 1
    %p74 = scmp.eq.s32.totalorder %s15, 1
    %p75 = scmp.ne.s32.totalorder %s70, %s72
    %p76 = scmp.eq.s32.totalorder %s15, 0
    %p77 = por %p75, %p76
    %p78 = scmp.ne.s32.totalorder %s70, %s72
    %p79 = scmp.eq.s32.totalorder %s20, 1
    %p80 = por %p78, %p79
    %p81 = scmp.ne.s32.totalorder %s72, %s73
    %p82 = scmp.eq.s32.totalorder %s20, 0
    %p83 = por %p81, %p82
    %p84 = scmp.ne.s32.totalorder %s72, %s73
    %p85 = scmp.eq.s32.totalorder %s21, 1
    %p86 = por %p84, %p85
    %p88 = scmp.ne.s32.totalorder %s73, %s87
    %p89 = scmp.eq.s32.totalorder %s21, 0
    %p90 = por %p88, %p89
    %s92 = sadd.s32 %s91, 1
    %p95 = scmp.eq.s32.totalorder %s15, 1
    %p96 = scmp.ne.s32.totalorder %s91, %s93
    %p97 = scmp.eq.s32.totalorder %s15, 0
    %p98 = por %p96, %p97
    %p99 = scmp.ne.s32.totalorder %s91, %s93
    %p100 = scmp.eq.s32.totalorder %s20, 1
    %p101 = por %p99, %p100
    %p102 = scmp.ne.s32.totalorder %s93, %s94
    %p103 = scmp.eq.s32.totalorder %s20, 0
    %p104 = por %p102, %p103
    %p105 = scmp.ne.s32.totalorder %s93, %s94
    %p106 = scmp.eq.s32.totalorder %s21, 1
    %p107 = por %p105, %p106
    %p109 = scmp.ne.s32.totalorder %s94, %s108
    %p110 = scmp.eq.s32.totalorder %s21, 0
    %p111 = por %p109, %p110
    %s113 = sadd.s32 %s112, 1
    %p116 = scmp.eq.s32.totalorder %s15, 1
    %p117 = scmp.ne.s32.totalorder %s112, %s114
    %p118 = scmp.eq.s32.totalorder %s15, 0
    %p119 = por %p117, %p118
    %p120 = scmp.ne.s32.totalorder %s112, %s114
    %p121 = scmp.eq.s32.totalorder %s20, 1
    %p122 = por %p120, %p121
    %p123 = scmp.ne.s32.totalorder %s114, %s115
    %p124 = scmp.eq.s32.totalorder %s20, 0
    %p125 = por %p123, %p124
    %p126 = scmp.ne.s32.totalorder %s114, %s115
    %p127 = scmp.eq.s32.totalorder %s21, 1
    %p128 = por %p126, %p127
    %p130 = scmp.ne.s32.totalorder %s115, %s129
    %p131 = scmp.eq.s32.totalorder %s21, 0
    %p132 = por %p130, %p131
    %s134 = sadd.s32 %s133, 1
    %p137 = scmp.eq.s32.totalorder %s15, 1
    %p138 = scmp.ne.s32.totalorder %s133, %s135
    %p139 = scmp.eq.s32.totalorder %s15, 0
    %p140 = por %p138, %p139
    %p141 = scmp.ne.s32.totalorder %s133, %s135
    %p142 = scmp.eq.s32.totalorder %s20, 1
    %p143 = por %p141, %p142
    %p144 = scmp.ne.s32.totalorder %s135, %s136
    %p145 = scmp.eq.s32.totalorder %s20, 0
    %p146 = por %p144, %p145
    %p147 = scmp.ne.s32.totalorder %s135, %s136
    %p148 = scmp.eq.s32.totalorder %s21, 1
    %p149 = por %p147, %p148
    %p151 = scmp.ne.s32.totalorder %s136, %s150
    %p152 = scmp.eq.s32.totalorder %s21, 0
    %p153 = por %p151, %p152
    %s155 = sadd.s32 %s154, 1
    %p158 = scmp.eq.s32.totalorder %s15, 1
    %p159 = scmp.ne.s32.totalorder %s154, %s156
    %p160 = scmp.eq.s32.totalorder %s15, 0
    %p161 = por %p159, %p160
    %p162 = scmp.ne.s32.totalorder %s154, %s156
    %p163 = scmp.eq.s32.totalorder %s20, 1
    %p164 = por %p162, %p163
    %p165 = scmp.ne.s32.totalorder %s156, %s157
    %p166 = scmp.eq.s32.totalorder %s20, 0
    %p167 = por %p165, %p166
    %p168 = scmp.ne.s32.totalorder %s156, %s157
    %p169 = scmp.eq.s32.totalorder %s21, 1
    %p170 = por %p168, %p169
    %p172 = scmp.ne.s32.totalorder %s157, %s171
    %p173 = scmp.eq.s32.totalorder %s21, 0
    %p174 = por %p172, %p173
    %s176 = sadd.s32 %s175, 1
    %p179 = scmp.eq.s32.totalorder %s15, 1
    %p180 = scmp.ne.s32.totalorder %s175, %s177
    %p181 = scmp.eq.s32.totalorder %s15, 0
    %p182 = por %p180, %p181
    %p183 = scmp.ne.s32.totalorder %s175, %s177
    %p184 = scmp.eq.s32.totalorder %s20, 1
    %p185 = por %p183, %p184
    %p186 = scmp.ne.s32.totalorder %s177, %s178
    %p187 = scmp.eq.s32.totalorder %s20, 0
    %p188 = por %p186, %p187
    %p189 = scmp.ne.s32.totalorder %s177, %s178
    %p190 = scmp.eq.s32.totalorder %s21, 1
    %p191 = por %p189, %p190
    %p193 = scmp.ne.s32.totalorder %s178, %s192
    %p194 = scmp.eq.s32.totalorder %s21, 0
    %p195 = por %p193, %p194
    %s197 = sadd.s32 %s196, 1
    %p200 = scmp.eq.s32.totalorder %s15, 1
    %p201 = scmp.ne.s32.totalorder %s196, %s198
    %p202 = scmp.eq.s32.totalorder %s15, 0
    %p203 = por %p201, %p202
    %p204 = scmp.ne.s32.totalorder %s196, %s198
    %p205 = scmp.eq.s32.totalorder %s20, 1
    %p206 = por %p204, %p205
    %p207 = scmp.ne.s32.totalorder %s198, %s199
    %p208 = scmp.eq.s32.totalorder %s20, 0
    %p209 = por %p207, %p208
    %p210 = scmp.ne.s32.totalorder %s198, %s199
    %p211 = scmp.eq.s32.totalorder %s21, 1
    %p212 = por %p210, %p211
    %p214 = scmp.ne.s32.totalorder %s199, %s213
    %p215 = scmp.eq.s32.totalorder %s21, 0
    %p216 = por %p214, %p215
    %s217 = ssub.s32 %s15, %s22
    %p218 = scmp.eq.s32.totalorder %s217, 0
    %s220 = sadd.s32 %s219, 1
    %s221 = scalar_select %p218, %s219, %s220
    %p224 = pneg %p218
    %p225 = scmp.eq.s32.totalorder %s15, 1
    %p226 = por %p224, %p225
    %p227 = scmp.ne.s32.totalorder %s219, %s222
    %p228 = scmp.eq.s32.totalorder %s15, 0
    %p229 = por %p227, %p228
    %p230 = scmp.ne.s32.totalorder %s219, %s222
    %p231 = scmp.eq.s32.totalorder %s20, 1
    %p232 = por %p230, %p231
    %p233 = scmp.ne.s32.totalorder %s222, %s223
    %p234 = scmp.eq.s32.totalorder %s20, 0
    %p235 = por %p233, %p234
    %p236 = scmp.ne.s32.totalorder %s222, %s223
    %p237 = scmp.eq.s32.totalorder %s21, 1
    %p238 = por %p236, %p237
    %p240 = scmp.ne.s32.totalorder %s223, %s239
    %p241 = scmp.eq.s32.totalorder %s21, 0
    %p242 = por %p240, %p241
    %p243 = scmp.le.s32.totalorder 1, %s15
    %p244 = scmp.lt.s32.totalorder %s15, 3
    %p245 = pnand %p243, %p244
    %p246 = pneg %p245
    // Predicated region
    $region9: #{tpu_custom_call.1} parent=5 // pred_check
      _
    $region10: #{tpu_custom_call.1} parent=5 // pred_check_branch
      %248 = sbr.rel (%p245) target = $region12
    $region11: #{tpu_custom_call.1} parent=5 // pred_region
      %s249 = ssub.s32 %s15, 1
      // Predicated region
      $region13: #{tpu_custom_call.1} parent=11 // pred_check
        %p250 = pneg %p62
      $region14: #{tpu_custom_call.1} parent=11 // pred_check_branch
        %252 = sbr.rel (%p250) target = $region16
      $region15: #{tpu_custom_call.1} parent=11 // pred_region
        _
      $region16: #{tpu_custom_call.1} parent=11 // pred_fallthru
        _
      // Predicated region
      $region17: #{tpu_custom_call.1} parent=11 // pred_check
        %p253 = pneg %p83
      $region18: #{tpu_custom_call.1} parent=11 // pred_check_branch
        %255 = sbr.rel (%p253) target = $region20
      $region19: #{tpu_custom_call.1} parent=11 // pred_region
        _
      $region20: #{tpu_custom_call.1} parent=11 // pred_fallthru
        _
      // Predicated region
      $region21: #{tpu_custom_call.1} parent=11 // pred_check
        %p256 = pneg %p104
      $region22: #{tpu_custom_call.1} parent=11 // pred_check_branch
        %258 = sbr.rel (%p256) target = $region24
      $region23: #{tpu_custom_call.1} parent=11 // pred_region
        _
      $region24: #{tpu_custom_call.1} parent=11 // pred_fallthru
        _
      // Predicated region
      $region25: #{tpu_custom_call.1} parent=11 // pred_check
        %p259 = pneg %p125
      $region26: #{tpu_custom_call.1} parent=11 // pred_check_branch
        %261 = sbr.rel (%p259) target = $region28
      $region27: #{tpu_custom_call.1} parent=11 // pred_region
        _
      $region28: #{tpu_custom_call.1} parent=11 // pred_fallthru
        _
      // Predicated region
      $region29: #{tpu_custom_call.1} parent=11 // pred_check
        %p262 = pneg %p146
      $region30: #{tpu_custom_call.1} parent=11 // pred_check_branch
        %264 = sbr.rel (%p262) target = $region32
      $region31: #{tpu_custom_call.1} parent=11 // pred_region
        _
      $region32: #{tpu_custom_call.1} parent=11 // pred_fallthru
        _
      // Predicated region
      $region33: #{tpu_custom_call.1} parent=11 // pred_check
        %p265 = pneg %p167
      $region34: #{tpu_custom_call.1} parent=11 // pred_check_branch
        %267 = sbr.rel (%p265) target = $region36
      $region35: #{tpu_custom_call.1} parent=11 // pred_region
        _
      $region36: #{tpu_custom_call.1} parent=11 // pred_fallthru
        _
      // Predicated region
      $region37: #{tpu_custom_call.1} parent=11 // pred_check
        %p268 = pneg %p188
      $region38: #{tpu_custom_call.1} parent=11 // pred_check_branch
        %270 = sbr.rel (%p268) target = $region40
      $region39: #{tpu_custom_call.1} parent=11 // pred_region
        _
      $region40: #{tpu_custom_call.1} parent=11 // pred_fallthru
        _
      // Predicated region
      $region41: #{tpu_custom_call.1} parent=11 // pred_check
        %p271 = pneg %p209
      $region42: #{tpu_custom_call.1} parent=11 // pred_check_branch
        %273 = sbr.rel (%p271) target = $region44
      $region43: #{tpu_custom_call.1} parent=11 // pred_region
        _
      $region44: #{tpu_custom_call.1} parent=11 // pred_fallthru
        _
    $region12: #{tpu_custom_call.1} parent=5 // pred_fallthru
      _
    %p274 = scmp.lt.s32.totalorder %s15, 2
    // Predicated region
    $region45: #{tpu_custom_call.1} parent=5 // pred_check
      %p275 = pneg %p274
    $region46: #{tpu_custom_call.1} parent=5 // pred_check_branch
      %277 = sbr.rel (%p275) target = $region48
    $region47: #{tpu_custom_call.1} parent=5 // pred_region
      // Predicated region
      $region49: #{tpu_custom_call.1} parent=47 // pred_check
        %p278 = pneg %p35
      $region50: #{tpu_custom_call.1} parent=47 // pred_check_branch
        %280 = sbr.rel (%p278) target = $region52
      $region51: #{tpu_custom_call.1} parent=47 // pred_region
        %s281 = smul.u32 16, %s15
        %p282 = scmp.lt.s32.totalorder %s281, 31
        %s283 = scalar_select %p282, %s281, 31
        %s284 = smul.addr %s283, 8
        %s285 = scalar_lea.vmem %s0, %s284
        %s286 = smul.u32 16, %s15
      $region52: #{tpu_custom_call.1} parent=47 // pred_fallthru
        _
    $region48: #{tpu_custom_call.1} parent=5 // pred_fallthru
      _
    %p287 = scmp.le.s32.totalorder 1, %s15
    %p288 = scmp.lt.s32.totalorder %s15, 3
    %p289 = pnand %p287, %p288
    %p290 = pneg %p289
    // Predicated region
    $region53: #{tpu_custom_call.1} parent=5 // pred_check
      _
    $region54: #{tpu_custom_call.1} parent=5 // pred_check_branch
      %292 = sbr.rel (%p289) target = $region56
    $region55: #{tpu_custom_call.1} parent=5 // pred_region
      %s293 = ssub.s32 %s15, 1
      %s294 = smul.u32 16, %s20
      %p295 = scmp.lt.s32.totalorder %s294, 31
      %s296 = scalar_select %p295, %s294, 31
      %s297 = smul.addr %s296, 8
      %s298 = scalar_lea.vmem %s0, %s297
      %p299 = pneg %p41
      %p300 = pneg %p38
      %p301 = pneg %p62
      %p302 = pneg %p59
      %p303 = pneg %p83
      %p304 = pneg %p80
      %p305 = pneg %p104
      %p306 = pneg %p101
      %p307 = pneg %p125
      %p308 = pneg %p122
      %p309 = pneg %p146
      %p310 = pneg %p143
      %p311 = pneg %p167
      %p312 = pneg %p164
      %p313 = pneg %p188
      %p314 = pneg %p185
      %p315 = pneg %p209
      %p316 = pneg %p206
      %p317 = pneg %p235
      %p318 = pneg %p232
      %s319 = smul.u32 16, %s20
      %p320 = scmp.lt.s32.totalorder %s319, 31
      %s321 = scalar_select %p320, %s319, 31
      %s322 = smul.addr %s321, 8
      %s323 = scalar_lea.vmem %s9, %s322
      %s324 = smul.u32 16, %s20
      %p325 = scmp.lt.s32.totalorder %s324, 31
      %s326 = scalar_select %p325, %s324, 31
      %s327 = smul.addr %s326, 8
      %s328 = scalar_lea.vmem %s0, %s327
      %s329 = smul.u32 16, %s20
      %s330 = smul.u32 16, %s20
      %p331 = scmp.lt.s32.totalorder %s330, 31
      %s332 = scalar_select %p331, %s330, 31
      %s333 = smul.addr %s332, 8
      %s334 = scalar_lea.vmem %s9, %s333
      %s335 = smul.u32 16, %s20
      %v337 = vld [vmem:[%s328] sm:$0xff]
      %v338 = vld [vmem:[%s328 + $0x8] sm:$0xff]
      %v339 = vld [vmem:[%s328 + $0x10] sm:$0xff]
      %v340 = vld [vmem:[%s328 + $0x18] sm:$0xff]
      %v341 = vld [vmem:[%s328 + $0x20] sm:$0xff]
      %v342 = vld [vmem:[%s328 + $0x28] sm:$0xff]
      %v343 = vld [vmem:[%s328 + $0x30] sm:$0xff]
      %v344 = vld [vmem:[%s328 + $0x38] sm:$0xff]
      %v345 = vld [vmem:[%s328 + $0x40] sm:$0xff]
      %v346 = vld [vmem:[%s328 + $0x48] sm:$0xff]
      %v347 = vld [vmem:[%s328 + $0x50] sm:$0xff]
      %v348 = vld [vmem:[%s328 + $0x58] sm:$0xff]
      %v349 = vld [vmem:[%s328 + $0x60] sm:$0xff]
      %v350 = vld [vmem:[%s328 + $0x68] sm:$0xff]
      %v351 = vld [vmem:[%s328 + $0x70] sm:$0xff]
      %v352 = vld [vmem:[%s328 + $0x78] sm:$0xff]
      %v353 = vld [vmem:[%s1] sm:$0xf]
      %355 = vset.pattern.permute.xlu0 0
      %356 = vperm.xlu0 %355, %v337
      %v357 = vpop.permute.xlu0 %356
      %360 = vset.pattern.permute.xlu0 0
      %361 = vperm.xlu0 %360, %v338
      %v362 = vpop.permute.xlu0 %361
      %365 = vset.pattern.permute.xlu0 0
      %366 = vperm.xlu0 %365, %v339
      %v367 = vpop.permute.xlu0 %366
      %370 = vset.pattern.permute.xlu0 0
      %371 = vperm.xlu0 %370, %v340
      %v372 = vpop.permute.xlu0 %371
      %375 = vset.pattern.permute.xlu0 0
      %376 = vperm.xlu0 %375, %v341
      %v377 = vpop.permute.xlu0 %376
      %380 = vset.pattern.permute.xlu0 0
      %381 = vperm.xlu0 %380, %v342
      %v382 = vpop.permute.xlu0 %381
      %385 = vset.pattern.permute.xlu0 0
      %386 = vperm.xlu0 %385, %v343
      %v387 = vpop.permute.xlu0 %386
      %390 = vset.pattern.permute.xlu0 0
      %391 = vperm.xlu0 %390, %v344
      %v392 = vpop.permute.xlu0 %391
      %395 = vset.pattern.permute.xlu0 0
      %396 = vperm.xlu0 %395, %v345
      %v397 = vpop.permute.xlu0 %396
      %400 = vset.pattern.permute.xlu0 0
      %401 = vperm.xlu0 %400, %v346
      %v402 = vpop.permute.xlu0 %401
      %405 = vset.pattern.permute.xlu0 0
      %406 = vperm.xlu0 %405, %v347
      %v407 = vpop.permute.xlu0 %406
      %410 = vset.pattern.permute.xlu0 0
      %411 = vperm.xlu0 %410, %v348
      %v412 = vpop.permute.xlu0 %411
      %415 = vset.pattern.permute.xlu0 0
      %416 = vperm.xlu0 %415, %v349
      %v417 = vpop.permute.xlu0 %416
      %420 = vset.pattern.permute.xlu0 0
      %421 = vperm.xlu0 %420, %v350
      %v422 = vpop.permute.xlu0 %421
      %425 = vset.pattern.permute.xlu0 0
      %426 = vperm.xlu0 %425, %v351
      %v427 = vpop.permute.xlu0 %426
      %430 = vset.pattern.permute.xlu0 0
      %431 = vperm.xlu0 %430, %v352
      %v432 = vpop.permute.xlu0 %431
      %v434 = vlaneseq
      %v435 = vshrl.u32 %v434, 7
      %v436 = vsub.s32 0, %v435
      %v437 = vrot.slane %v353, %v436
      %v438 = vmul.f32 %v357, %v437
      %v439 = vmul.f32 %v362, %v437
      %v440 = vmul.f32 %v367, %v437
      %v441 = vmul.f32 %v372, %v437
      %v442 = vmul.f32 %v377, %v437
      %v443 = vmul.f32 %v382, %v437
      %v444 = vmul.f32 %v387, %v437
      %v445 = vmul.f32 %v392, %v437
      %v446 = vmul.f32 %v397, %v437
      %v447 = vmul.f32 %v402, %v437
      %v448 = vmul.f32 %v407, %v437
      %v449 = vmul.f32 %v412, %v437
      %v450 = vmul.f32 %v417, %v437
      %v451 = vmul.f32 %v422, %v437
      %v452 = vmul.f32 %v427, %v437
      %v453 = vmul.f32 %v432, %v437
      %454 = vset.pattern.permute.xlu0 1
      %455 = vperm.xlu0 %454, %v337
      %v456 = vpop.permute.xlu0 %455
      %458 = vset.pattern.permute.xlu0 1
      %459 = vperm.xlu0 %458, %v338
      %v460 = vpop.permute.xlu0 %459
      %462 = vset.pattern.permute.xlu0 1
      %463 = vperm.xlu0 %462, %v339
      %v464 = vpop.permute.xlu0 %463
      %466 = vset.pattern.permute.xlu0 1
      %467 = vperm.xlu0 %466, %v340
      %v468 = vpop.permute.xlu0 %467
      %470 = vset.pattern.permute.xlu0 1
      %471 = vperm.xlu0 %470, %v341
      %v472 = vpop.permute.xlu0 %471
      %474 = vset.pattern.permute.xlu0 1
      %475 = vperm.xlu0 %474, %v342
      %v476 = vpop.permute.xlu0 %475
      %478 = vset.pattern.permute.xlu0 1
      %479 = vperm.xlu0 %478, %v343
      %v480 = vpop.permute.xlu0 %479
      %482 = vset.pattern.permute.xlu0 1
      %483 = vperm.xlu0 %482, %v344
      %v484 = vpop.permute.xlu0 %483
      %486 = vset.pattern.permute.xlu0 1
      %487 = vperm.xlu0 %486, %v345
      %v488 = vpop.permute.xlu0 %487
      %490 = vset.pattern.permute.xlu0 1
      %491 = vperm.xlu0 %490, %v346
      %v492 = vpop.permute.xlu0 %491
      %494 = vset.pattern.permute.xlu0 1
      %495 = vperm.xlu0 %494, %v347
      %v496 = vpop.permute.xlu0 %495
      %498 = vset.pattern.permute.xlu0 1
      %499 = vperm.xlu0 %498, %v348
      %v500 = vpop.permute.xlu0 %499
      %502 = vset.pattern.permute.xlu0 1
      %503 = vperm.xlu0 %502, %v349
      %v504 = vpop.permute.xlu0 %503
      %506 = vset.pattern.permute.xlu0 1
      %507 = vperm.xlu0 %506, %v350
      %v508 = vpop.permute.xlu0 %507
      %510 = vset.pattern.permute.xlu0 1
      %511 = vperm.xlu0 %510, %v351
      %v512 = vpop.permute.xlu0 %511
      %514 = vset.pattern.permute.xlu0 1
      %515 = vperm.xlu0 %514, %v352
      %v516 = vpop.permute.xlu0 %515
      %v518 = vlaneseq
      %v519 = vshrl.u32 %v518, 7
      %v520 = vsub.s32 1, %v519
      %v521 = vrot.slane %v353, %v520
      %v522 = vmul.f32 %v456, %v521
      %v523 = vmul.f32 %v460, %v521
      %v524 = vmul.f32 %v464, %v521
      %v525 = vmul.f32 %v468, %v521
      %v526 = vmul.f32 %v472, %v521
      %v527 = vmul.f32 %v476, %v521
      %v528 = vmul.f32 %v480, %v521
      %v529 = vmul.f32 %v484, %v521
      %v530 = vmul.f32 %v488, %v521
      %v531 = vmul.f32 %v492, %v521
      %v532 = vmul.f32 %v496, %v521
      %v533 = vmul.f32 %v500, %v521
      %v534 = vmul.f32 %v504, %v521
      %v535 = vmul.f32 %v508, %v521
      %v536 = vmul.f32 %v512, %v521
      %v537 = vmul.f32 %v516, %v521
      %v538 = vadd.f32 %v438, %v522
      %v539 = vadd.f32 %v439, %v523
      %v540 = vadd.f32 %v440, %v524
      %v541 = vadd.f32 %v441, %v525
      %v542 = vadd.f32 %v442, %v526
      %v543 = vadd.f32 %v443, %v527
      %v544 = vadd.f32 %v444, %v528
      %v545 = vadd.f32 %v445, %v529
      %v546 = vadd.f32 %v446, %v530
      %v547 = vadd.f32 %v447, %v531
      %v548 = vadd.f32 %v448, %v532
      %v549 = vadd.f32 %v449, %v533
      %v550 = vadd.f32 %v450, %v534
      %v551 = vadd.f32 %v451, %v535
      %v552 = vadd.f32 %v452, %v536
      %v553 = vadd.f32 %v453, %v537
      %554 = vset.pattern.permute.xlu0 2
      %555 = vperm.xlu0 %554, %v337
      %v556 = vpop.permute.xlu0 %555
      %558 = vset.pattern.permute.xlu0 2
      %559 = vperm.xlu0 %558, %v338
      %v560 = vpop.permute.xlu0 %559
      %562 = vset.pattern.permute.xlu0 2
      %563 = vperm.xlu0 %562, %v339
      %v564 = vpop.permute.xlu0 %563
      %566 = vset.pattern.permute.xlu0 2
      %567 = vperm.xlu0 %566, %v340
      %v568 = vpop.permute.xlu0 %567
      %570 = vset.pattern.permute.xlu0 2
      %571 = vperm.xlu0 %570, %v341
      %v572 = vpop.permute.xlu0 %571
      %574 = vset.pattern.permute.xlu0 2
      %575 = vperm.xlu0 %574, %v342
      %v576 = vpop.permute.xlu0 %575
      %578 = vset.pattern.permute.xlu0 2
      %579 = vperm.xlu0 %578, %v343
      %v580 = vpop.permute.xlu0 %579
      %582 = vset.pattern.permute.xlu0 2
      %583 = vperm.xlu0 %582, %v344
      %v584 = vpop.permute.xlu0 %583
      %586 = vset.pattern.permute.xlu0 2
      %587 = vperm.xlu0 %586, %v345
      %v588 = vpop.permute.xlu0 %587
      %590 = vset.pattern.permute.xlu0 2
      %591 = vperm.xlu0 %590, %v346
      %v592 = vpop.permute.xlu0 %591
      %594 = vset.pattern.permute.xlu0 2
      %595 = vperm.xlu0 %594, %v347
      %v596 = vpop.permute.xlu0 %595
      %598 = vset.pattern.permute.xlu0 2
      %599 = vperm.xlu0 %598, %v348
      %v600 = vpop.permute.xlu0 %599
      %602 = vset.pattern.permute.xlu0 2
      %603 = vperm.xlu0 %602, %v349
      %v604 = vpop.permute.xlu0 %603
      %606 = vset.pattern.permute.xlu0 2
      %607 = vperm.xlu0 %606, %v350
      %v608 = vpop.permute.xlu0 %607
      %610 = vset.pattern.permute.xlu0 2
      %611 = vperm.xlu0 %610, %v351
      %v612 = vpop.permute.xlu0 %611
      %614 = vset.pattern.permute.xlu0 2
      %615 = vperm.xlu0 %614, %v352
      %v616 = vpop.permute.xlu0 %615
      %v618 = vlaneseq
      %v619 = vshrl.u32 %v618, 7
      %v620 = vsub.s32 2, %v619
      %v621 = vrot.slane %v353, %v620
      %v622 = vmul.f32 %v556, %v621
      %v623 = vmul.f32 %v560, %v621
      %v624 = vmul.f32 %v564, %v621
      %v625 = vmul.f32 %v568, %v621
      %v626 = vmul.f32 %v572, %v621
      %v627 = vmul.f32 %v576, %v621
      %v628 = vmul.f32 %v580, %v621
      %v629 = vmul.f32 %v584, %v621
      %v630 = vmul.f32 %v588, %v621
      %v631 = vmul.f32 %v592, %v621
      %v632 = vmul.f32 %v596, %v621
      %v633 = vmul.f32 %v600, %v621
      %v634 = vmul.f32 %v604, %v621
      %v635 = vmul.f32 %v608, %v621
      %v636 = vmul.f32 %v612, %v621
      %v637 = vmul.f32 %v616, %v621
      %v638 = vadd.f32 %v538, %v622
      %v639 = vadd.f32 %v539, %v623
      %v640 = vadd.f32 %v540, %v624
      %v641 = vadd.f32 %v541, %v625
      %v642 = vadd.f32 %v542, %v626
      %v643 = vadd.f32 %v543, %v627
      %v644 = vadd.f32 %v544, %v628
      %v645 = vadd.f32 %v545, %v629
      %v646 = vadd.f32 %v546, %v630
      %v647 = vadd.f32 %v547, %v631
      %v648 = vadd.f32 %v548, %v632
      %v649 = vadd.f32 %v549, %v633
      %v650 = vadd.f32 %v550, %v634
      %v651 = vadd.f32 %v551, %v635
      %v652 = vadd.f32 %v552, %v636
      %v653 = vadd.f32 %v553, %v637
      %654 = vset.pattern.permute.xlu0 3
      %655 = vperm.xlu0 %654, %v337
      %v656 = vpop.permute.xlu0 %655
      %658 = vset.pattern.permute.xlu0 3
      %659 = vperm.xlu0 %658, %v338
      %v660 = vpop.permute.xlu0 %659
      %662 = vset.pattern.permute.xlu0 3
      %663 = vperm.xlu0 %662, %v339
      %v664 = vpop.permute.xlu0 %663
      %666 = vset.pattern.permute.xlu0 3
      %667 = vperm.xlu0 %666, %v340
      %v668 = vpop.permute.xlu0 %667
      %670 = vset.pattern.permute.xlu0 3
      %671 = vperm.xlu0 %670, %v341
      %v672 = vpop.permute.xlu0 %671
      %674 = vset.pattern.permute.xlu0 3
      %675 = vperm.xlu0 %674, %v342
      %v676 = vpop.permute.xlu0 %675
      %678 = vset.pattern.permute.xlu0 3
      %679 = vperm.xlu0 %678, %v343
      %v680 = vpop.permute.xlu0 %679
      %682 = vset.pattern.permute.xlu0 3
      %683 = vperm.xlu0 %682, %v344
      %v684 = vpop.permute.xlu0 %683
      %686 = vset.pattern.permute.xlu0 3
      %687 = vperm.xlu0 %686, %v345
      %v688 = vpop.permute.xlu0 %687
      %690 = vset.pattern.permute.xlu0 3
      %691 = vperm.xlu0 %690, %v346
      %v692 = vpop.permute.xlu0 %691
      %694 = vset.pattern.permute.xlu0 3
      %695 = vperm.xlu0 %694, %v347
      %v696 = vpop.permute.xlu0 %695
      %698 = vset.pattern.permute.xlu0 3
      %699 = vperm.xlu0 %698, %v348
      %v700 = vpop.permute.xlu0 %699
      %702 = vset.pattern.permute.xlu0 3
      %703 = vperm.xlu0 %702, %v349
      %v704 = vpop.permute.xlu0 %703
      %706 = vset.pattern.permute.xlu0 3
      %707 = vperm.xlu0 %706, %v350
      %v708 = vpop.permute.xlu0 %707
      %710 = vset.pattern.permute.xlu0 3
      %711 = vperm.xlu0 %710, %v351
      %v712 = vpop.permute.xlu0 %711
      %714 = vset.pattern.permute.xlu0 3
      %715 = vperm.xlu0 %714, %v352
      %v716 = vpop.permute.xlu0 %715
      %v718 = vlaneseq
      %v719 = vshrl.u32 %v718, 7
      %v720 = vsub.s32 3, %v719
      %v721 = vrot.slane %v353, %v720
      %v722 = vmul.f32 %v656, %v721
      %v723 = vmul.f32 %v660, %v721
      %v724 = vmul.f32 %v664, %v721
      %v725 = vmul.f32 %v668, %v721
      %v726 = vmul.f32 %v672, %v721
      %v727 = vmul.f32 %v676, %v721
      %v728 = vmul.f32 %v680, %v721
      %v729 = vmul.f32 %v684, %v721
      %v730 = vmul.f32 %v688, %v721
      %v731 = vmul.f32 %v692, %v721
      %v732 = vmul.f32 %v696, %v721
      %v733 = vmul.f32 %v700, %v721
      %v734 = vmul.f32 %v704, %v721
      %v735 = vmul.f32 %v708, %v721
      %v736 = vmul.f32 %v712, %v721
      %v737 = vmul.f32 %v716, %v721
      %v738 = vadd.f32 %v638, %v722
      %v739 = vadd.f32 %v639, %v723
      %v740 = vadd.f32 %v640, %v724
      %v741 = vadd.f32 %v641, %v725
      %v742 = vadd.f32 %v642, %v726
      %v743 = vadd.f32 %v643, %v727
      %v744 = vadd.f32 %v644, %v728
      %v745 = vadd.f32 %v645, %v729
      %v746 = vadd.f32 %v646, %v730
      %v747 = vadd.f32 %v647, %v731
      %v748 = vadd.f32 %v648, %v732
      %v749 = vadd.f32 %v649, %v733
      %v750 = vadd.f32 %v650, %v734
      %v751 = vadd.f32 %v651, %v735
      %v752 = vadd.f32 %v652, %v736
      %v753 = vadd.f32 %v653, %v737
      %v754 = vld [vmem:[%s2] sm:$0x1]
      %v756 = vlaneseq
      %v757 = vshrl.u32 %v756, 7
      %v758 = vsub.s32 0, %v757
      %v759 = vrot.slane %v754, %v758
      %v761 = vadd.f32 %v738, %v759
      %v762 = vadd.f32 %v739, %v759
      %v763 = vadd.f32 %v740, %v759
      %v764 = vadd.f32 %v741, %v759
      %v765 = vadd.f32 %v742, %v759
      %v766 = vadd.f32 %v743, %v759
      %v767 = vadd.f32 %v744, %v759
      %v768 = vadd.f32 %v745, %v759
      %v769 = vadd.f32 %v746, %v759
      %v770 = vadd.f32 %v747, %v759
      %v771 = vadd.f32 %v748, %v759
      %v772 = vadd.f32 %v749, %v759
      %v773 = vadd.f32 %v750, %v759
      %v774 = vadd.f32 %v751, %v759
      %v775 = vadd.f32 %v752, %v759
      %v776 = vadd.f32 %v753, %v759
      %v777 = vmax.f32 %v761, 0.0
      %v778 = vmax.f32 %v762, 0.0
      %v779 = vmax.f32 %v763, 0.0
      %v780 = vmax.f32 %v764, 0.0
      %v781 = vmax.f32 %v765, 0.0
      %v782 = vmax.f32 %v766, 0.0
      %v783 = vmax.f32 %v767, 0.0
      %v784 = vmax.f32 %v768, 0.0
      %v785 = vmax.f32 %v769, 0.0
      %v786 = vmax.f32 %v770, 0.0
      %v787 = vmax.f32 %v771, 0.0
      %v788 = vmax.f32 %v772, 0.0
      %v789 = vmax.f32 %v773, 0.0
      %v790 = vmax.f32 %v774, 0.0
      %v791 = vmax.f32 %v775, 0.0
      %v792 = vmax.f32 %v776, 0.0
      %v793 = vpack.c.bf16 %v778, %v777
      %v794 = vpack.c.bf16 %v780, %v779
      %v795 = vpack.c.bf16 %v782, %v781
      %v796 = vpack.c.bf16 %v784, %v783
      %v797 = vpack.c.bf16 %v786, %v785
      %v798 = vpack.c.bf16 %v788, %v787
      %v799 = vpack.c.bf16 %v790, %v789
      %v800 = vpack.c.bf16 %v792, %v791
      %v801 = vld [vmem:[%s3] sm:$0xf]
      %v802 = vld [vmem:[%s3 + $0x4] sm:$0xf]
      %v803 = vld [vmem:[%s3 + $0x8] sm:$0xf]
      %v804 = vld [vmem:[%s3 + $0xc] sm:$0xf]
      %v805 = vld [vmem:[%s3 + $0x10] sm:$0xf]
      %v806 = vld [vmem:[%s3 + $0x14] sm:$0xf]
      %v807 = vld [vmem:[%s3 + $0x18] sm:$0xf]
      %v808 = vld [vmem:[%s3 + $0x1c] sm:$0xf]
      %v809 = vld [vmem:[%s3 + $0x20] sm:$0xf]
      %v810 = vld [vmem:[%s3 + $0x24] sm:$0xf]
      %v811 = vld [vmem:[%s3 + $0x28] sm:$0xf]
      %v812 = vld [vmem:[%s3 + $0x2c] sm:$0xf]
      %v813 = vld [vmem:[%s3 + $0x30] sm:$0xf]
      %v814 = vld [vmem:[%s3 + $0x34] sm:$0xf]
      %v815 = vld [vmem:[%s3 + $0x38] sm:$0xf]
      %v816 = vld [vmem:[%s3 + $0x3c] sm:$0xf]
      %v817 = vld [vmem:[%s4] sm:$0x1]
      %v819 = vlaneseq
      %v820 = vshrl.u32 %v819, 7
      %v821 = vsub.s32 0, %v820
      %v822 = vrot.slane %v817, %v821
      %v840 = vunpack.c.l.b16 %v801
      %v841 = vunpack.c.l.b16 %v802
      %v842 = vunpack.c.l.b16 %v803
      %v843 = vunpack.c.l.b16 %v804
      %v844 = vunpack.c.l.b16 %v805
      %v845 = vunpack.c.l.b16 %v806
      %v846 = vunpack.c.l.b16 %v807
      %v847 = vunpack.c.l.b16 %v808
      %v848 = vunpack.c.l.b16 %v809
      %v849 = vunpack.c.l.b16 %v810
      %v850 = vunpack.c.l.b16 %v811
      %v851 = vunpack.c.l.b16 %v812
      %v852 = vunpack.c.l.b16 %v813
      %v853 = vunpack.c.l.b16 %v814
      %v854 = vunpack.c.l.b16 %v815
      %v855 = vunpack.c.l.b16 %v816
      %v856 = vpack.c.b16 %v841, %v840
      %v857 = vpack.c.b16 %v843, %v842
      %v858 = vpack.c.b16 %v845, %v844
      %v859 = vpack.c.b16 %v847, %v846
      %v860 = vpack.c.b16 %v849, %v848
      %v861 = vpack.c.b16 %v851, %v850
      %v862 = vpack.c.b16 %v853, %v852
      %v863 = vpack.c.b16 %v855, %v854
      %872 = vmatprep.subr.bf16.mxu0 0
      %873 = vmatpush1.bf16.msra.mxu0 %v863
      %874 = vmatprep.subr.bf16.mxu0 0
      %875 = vmatpush1.bf16.msra.mxu0 %v862
      %876 = vmatprep.subr.bf16.mxu0 0
      %877 = vmatpush1.bf16.msra.mxu0 %v861
      %878 = vmatprep.subr.bf16.mxu0 0
      %879 = vmatpush1.bf16.msra.mxu0 %v860
      %880 = vmatprep.subr.bf16.mxu0 0
      %881 = vmatpush1.bf16.msra.mxu0 %v859
      %882 = vmatprep.subr.bf16.mxu0 0
      %883 = vmatpush1.bf16.msra.mxu0 %v858
      %884 = vmatprep.subr.bf16.mxu0 0
      %885 = vmatpush1.bf16.msra.mxu0 %v857
      %886 = vmatprep.subr.bf16.mxu0 0
      %887 = vmatpush1.bf16.msra.mxu0 %v856
      %888 = vmatprep.subr.bf16.mxu0 0
      %889 = vmatpush2.bf16.msra.mxu0 0
      %890 = vmatprep.subr.bf16.mxu0 0
      %891 = vmatpush2.bf16.msra.mxu0 0
      %892 = vmatprep.subr.bf16.mxu0 0
      %893 = vmatpush2.bf16.msra.mxu0 0
      %894 = vmatprep.subr.bf16.mxu0 0
      %895 = vmatpush2.bf16.msra.mxu0 0
      %896 = vmatprep.subr.bf16.mxu0 0
      %897 = vmatpush2.bf16.msra.mxu0 0
      %898 = vmatprep.subr.bf16.mxu0 0
      %899 = vmatpush2.bf16.msra.mxu0 0
      %900 = vmatprep.subr.bf16.mxu0 0
      %901 = vmatpush2.bf16.msra.mxu0 0
      %902 = vmatprep.subr.bf16.mxu0 0
      %903 = vmatpush2.bf16.msra.mxu0 0
      %904 = vmatprep.mubr.bf16.mxu0 0
      %905 = vmatmul.mubr.bf16.gmra.mxu0 %v793
      %v906 = vpop.f32.mrf.mxu0
      %v907 = vadd.f32 %v822, %v906
      %v908 = vpop.f32.mrf.mxu0
      %v909 = vpop.f32.mrf.mxu0
      %v910 = vadd.f32 %v822, %v909
      %v911 = vpop.f32.mrf.mxu0
      %912 = vmatprep.mubr.bf16.mxu0 0
      %913 = vmatmul.mubr.bf16.gmra.mxu0 %v794
      %v914 = vpop.f32.mrf.mxu0
      %v915 = vadd.f32 %v822, %v914
      %v916 = vpop.f32.mrf.mxu0
      %v917 = vpop.f32.mrf.mxu0
      %v918 = vadd.f32 %v822, %v917
      %v919 = vpop.f32.mrf.mxu0
      %920 = vmatprep.mubr.bf16.mxu0 0
      %921 = vmatmul.mubr.bf16.gmra.mxu0 %v795
      %v922 = vpop.f32.mrf.mxu0
      %v923 = vadd.f32 %v822, %v922
      %v924 = vpop.f32.mrf.mxu0
      %v925 = vpop.f32.mrf.mxu0
      %v926 = vadd.f32 %v822, %v925
      %v927 = vpop.f32.mrf.mxu0
      %928 = vmatprep.mubr.bf16.mxu0 0
      %929 = vmatmul.mubr.bf16.gmra.mxu0 %v796
      %v930 = vpop.f32.mrf.mxu0
      %v931 = vadd.f32 %v822, %v930
      %v932 = vpop.f32.mrf.mxu0
      %v933 = vpop.f32.mrf.mxu0
      %v934 = vadd.f32 %v822, %v933
      %v935 = vpop.f32.mrf.mxu0
      %936 = vmatprep.mubr.bf16.mxu0 0
      %937 = vmatmul.mubr.bf16.gmra.mxu0 %v797
      %v938 = vpop.f32.mrf.mxu0
      %v939 = vadd.f32 %v822, %v938
      %v940 = vpop.f32.mrf.mxu0
      %v941 = vpop.f32.mrf.mxu0
      %v942 = vadd.f32 %v822, %v941
      %v943 = vpop.f32.mrf.mxu0
      %944 = vmatprep.mubr.bf16.mxu0 0
      %945 = vmatmul.mubr.bf16.gmra.mxu0 %v798
      %v946 = vpop.f32.mrf.mxu0
      %v947 = vadd.f32 %v822, %v946
      %v948 = vpop.f32.mrf.mxu0
      %v949 = vpop.f32.mrf.mxu0
      %v950 = vadd.f32 %v822, %v949
      %v951 = vpop.f32.mrf.mxu0
      %952 = vmatprep.mubr.bf16.mxu0 0
      %953 = vmatmul.mubr.bf16.gmra.mxu0 %v799
      %v954 = vpop.f32.mrf.mxu0
      %v955 = vadd.f32 %v822, %v954
      %v956 = vpop.f32.mrf.mxu0
      %v957 = vpop.f32.mrf.mxu0
      %v958 = vadd.f32 %v822, %v957
      %v959 = vpop.f32.mrf.mxu0
      %960 = vmatprep.mubr.bf16.mxu0 0
      %961 = vmatmul.mubr.bf16.gmra.mxu0 %v800
      %v962 = vpop.f32.mrf.mxu0
      %v963 = vadd.f32 %v822, %v962
      %v964 = vpop.f32.mrf.mxu0
      %v965 = vpop.f32.mrf.mxu0
      %v966 = vadd.f32 %v822, %v965
      %v967 = vpop.f32.mrf.mxu0
      %968 = vdwg.mxu0
      %v969 = vmax.f32 %v907, 0.0
      %v970 = vmax.f32 %v910, 0.0
      %v971 = vmax.f32 %v915, 0.0
      %v972 = vmax.f32 %v918, 0.0
      %v973 = vmax.f32 %v923, 0.0
      %v974 = vmax.f32 %v926, 0.0
      %v975 = vmax.f32 %v931, 0.0
      %v976 = vmax.f32 %v934, 0.0
      %v977 = vmax.f32 %v939, 0.0
      %v978 = vmax.f32 %v942, 0.0
      %v979 = vmax.f32 %v947, 0.0
      %v980 = vmax.f32 %v950, 0.0
      %v981 = vmax.f32 %v955, 0.0
      %v982 = vmax.f32 %v958, 0.0
      %v983 = vmax.f32 %v963, 0.0
      %v984 = vmax.f32 %v966, 0.0
      %v985 = vpack.c.bf16 %v970, %v969
      %v986 = vpack.c.bf16 %v972, %v971
      %v987 = vpack.c.bf16 %v974, %v973
      %v988 = vpack.c.bf16 %v976, %v975
      %v989 = vpack.c.bf16 %v978, %v977
      %v990 = vpack.c.bf16 %v980, %v979
      %v991 = vpack.c.bf16 %v982, %v981
      %v992 = vpack.c.bf16 %v984, %v983
      %v993 = vld [vmem:[%s5] sm:$0xf]
      %v994 = vld [vmem:[%s5 + $0x4] sm:$0xf]
      %v995 = vld [vmem:[%s5 + $0x8] sm:$0xf]
      %v996 = vld [vmem:[%s5 + $0xc] sm:$0xf]
      %v997 = vld [vmem:[%s5 + $0x10] sm:$0xf]
      %v998 = vld [vmem:[%s5 + $0x14] sm:$0xf]
      %v999 = vld [vmem:[%s5 + $0x18] sm:$0xf]
      %v1000 = vld [vmem:[%s5 + $0x1c] sm:$0xf]
      %v1001 = vld [vmem:[%s6] sm:$0x1]
      %v1003 = vlaneseq
      %v1004 = vshrl.u32 %v1003, 7
      %v1005 = vsub.s32 0, %v1004
      %v1006 = vrot.slane %v1001, %v1005
      %v1016 = vunpack.c.l.b16 %v993
      %v1017 = vunpack.c.l.b16 %v994
      %v1018 = vunpack.c.l.b16 %v995
      %v1019 = vunpack.c.l.b16 %v996
      %v1020 = vunpack.c.l.b16 %v997
      %v1021 = vunpack.c.l.b16 %v998
      %v1022 = vunpack.c.l.b16 %v999
      %v1023 = vunpack.c.l.b16 %v1000
      %v1024 = vpack.c.b16 %v1017, %v1016
      %v1025 = vpack.c.b16 %v1019, %v1018
      %v1026 = vpack.c.b16 %v1021, %v1020
      %v1027 = vpack.c.b16 %v1023, %v1022
      %vm1032 = vcmask 523264
      %v1034 = vsel %vm1032, %v985, 0
      %v1037 = vsel %vm1032, %v986, 0
      %v1040 = vsel %vm1032, %v987, 0
      %v1043 = vsel %vm1032, %v988, 0
      %v1046 = vsel %vm1032, %v989, 0
      %v1049 = vsel %vm1032, %v990, 0
      %v1052 = vsel %vm1032, %v991, 0
      %v1055 = vsel %vm1032, %v992, 0
      %1057 = vmatprep.subr.bf16.mxu0 0
      %1058 = vmatpush1.bf16.msra.mxu0 0
      %1059 = vmatprep.subr.bf16.mxu0 0
      %1060 = vmatpush1.bf16.msra.mxu0 0
      %1061 = vmatprep.subr.bf16.mxu0 0
      %1062 = vmatpush1.bf16.msra.mxu0 0
      %1063 = vmatprep.subr.bf16.mxu0 0
      %1064 = vmatpush1.bf16.msra.mxu0 0
      %1065 = vmatprep.subr.bf16.mxu0 0
      %1066 = vmatpush1.bf16.msra.mxu0 %v1027
      %1067 = vmatprep.subr.bf16.mxu0 0
      %1068 = vmatpush1.bf16.msra.mxu0 %v1026
      %1069 = vmatprep.subr.bf16.mxu0 0
      %1070 = vmatpush1.bf16.msra.mxu0 %v1025
      %1071 = vmatprep.subr.bf16.mxu0 0
      %1072 = vmatpush1.bf16.msra.mxu0 %v1024
      %1073 = vmatprep.subr.bf16.mxu0 0
      %1074 = vmatpush2.bf16.msra.mxu0 0
      %1075 = vmatprep.subr.bf16.mxu0 0
      %1076 = vmatpush2.bf16.msra.mxu0 0
      %1077 = vmatprep.subr.bf16.mxu0 0
      %1078 = vmatpush2.bf16.msra.mxu0 0
      %1079 = vmatprep.subr.bf16.mxu0 0
      %1080 = vmatpush2.bf16.msra.mxu0 0
      %1081 = vmatprep.subr.bf16.mxu0 0
      %1082 = vmatpush2.bf16.msra.mxu0 0
      %1083 = vmatprep.subr.bf16.mxu0 0
      %1084 = vmatpush2.bf16.msra.mxu0 0
      %1085 = vmatprep.subr.bf16.mxu0 0
      %1086 = vmatpush2.bf16.msra.mxu0 0
      %1087 = vmatprep.subr.bf16.mxu0 0
      %1088 = vmatpush2.bf16.msra.mxu0 0
      %1089 = vmatprep.mubr.bf16.mxu0 0
      %1090 = vmatmul.mubr.bf16.gmra.mxu0 %v1034
      %v1091 = vpop.f32.mrf.mxu0
      %v1092 = vadd.f32 %v1006, %v1091
      %v1093 = vpop.f32.mrf.mxu0
      %v1094 = vpop.f32.mrf.mxu0
      %v1095 = vadd.f32 %v1006, %v1094
      %v1096 = vpop.f32.mrf.mxu0
      %1097 = vmatprep.mubr.bf16.mxu0 0
      %1098 = vmatmul.mubr.bf16.gmra.mxu0 %v1037
      %v1099 = vpop.f32.mrf.mxu0
      %v1100 = vadd.f32 %v1006, %v1099
      %v1101 = vpop.f32.mrf.mxu0
      %v1102 = vpop.f32.mrf.mxu0
      %v1103 = vadd.f32 %v1006, %v1102
      %v1104 = vpop.f32.mrf.mxu0
      %1105 = vmatprep.mubr.bf16.mxu0 0
      %1106 = vmatmul.mubr.bf16.gmra.mxu0 %v1040
      %v1107 = vpop.f32.mrf.mxu0
      %v1108 = vadd.f32 %v1006, %v1107
      %v1109 = vpop.f32.mrf.mxu0
      %v1110 = vpop.f32.mrf.mxu0
      %v1111 = vadd.f32 %v1006, %v1110
      %v1112 = vpop.f32.mrf.mxu0
      %1113 = vmatprep.mubr.bf16.mxu0 0
      %1114 = vmatmul.mubr.bf16.gmra.mxu0 %v1043
      %v1115 = vpop.f32.mrf.mxu0
      %v1116 = vadd.f32 %v1006, %v1115
      %v1117 = vpop.f32.mrf.mxu0
      %v1118 = vpop.f32.mrf.mxu0
      %v1119 = vadd.f32 %v1006, %v1118
      %v1120 = vpop.f32.mrf.mxu0
      %1121 = vmatprep.mubr.bf16.mxu0 0
      %1122 = vmatmul.mubr.bf16.gmra.mxu0 %v1046
      %v1123 = vpop.f32.mrf.mxu0
      %v1124 = vadd.f32 %v1006, %v1123
      %v1125 = vpop.f32.mrf.mxu0
      %v1126 = vpop.f32.mrf.mxu0
      %v1127 = vadd.f32 %v1006, %v1126
      %v1128 = vpop.f32.mrf.mxu0
      %1129 = vmatprep.mubr.bf16.mxu0 0
      %1130 = vmatmul.mubr.bf16.gmra.mxu0 %v1049
      %v1131 = vpop.f32.mrf.mxu0
      %v1132 = vadd.f32 %v1006, %v1131
      %v1133 = vpop.f32.mrf.mxu0
      %v1134 = vpop.f32.mrf.mxu0
      %v1135 = vadd.f32 %v1006, %v1134
      %v1136 = vpop.f32.mrf.mxu0
      %1137 = vmatprep.mubr.bf16.mxu0 0
      %1138 = vmatmul.mubr.bf16.gmra.mxu0 %v1052
      %v1139 = vpop.f32.mrf.mxu0
      %v1140 = vadd.f32 %v1006, %v1139
      %v1141 = vpop.f32.mrf.mxu0
      %v1142 = vpop.f32.mrf.mxu0
      %v1143 = vadd.f32 %v1006, %v1142
      %v1144 = vpop.f32.mrf.mxu0
      %1145 = vmatprep.mubr.bf16.mxu0 0
      %1146 = vmatmul.mubr.bf16.gmra.mxu0 %v1055
      %v1147 = vpop.f32.mrf.mxu0
      %v1148 = vadd.f32 %v1006, %v1147
      %v1149 = vpop.f32.mrf.mxu0
      %v1150 = vpop.f32.mrf.mxu0
      %v1151 = vadd.f32 %v1006, %v1150
      %v1152 = vpop.f32.mrf.mxu0
      %1153 = vdwg.mxu0
      %v1154 = vmax.f32 %v1092, 0.0
      %v1155 = vmax.f32 %v1095, 0.0
      %v1156 = vmax.f32 %v1100, 0.0
      %v1157 = vmax.f32 %v1103, 0.0
      %v1158 = vmax.f32 %v1108, 0.0
      %v1159 = vmax.f32 %v1111, 0.0
      %v1160 = vmax.f32 %v1116, 0.0
      %v1161 = vmax.f32 %v1119, 0.0
      %v1162 = vmax.f32 %v1124, 0.0
      %v1163 = vmax.f32 %v1127, 0.0
      %v1164 = vmax.f32 %v1132, 0.0
      %v1165 = vmax.f32 %v1135, 0.0
      %v1166 = vmax.f32 %v1140, 0.0
      %v1167 = vmax.f32 %v1143, 0.0
      %v1168 = vmax.f32 %v1148, 0.0
      %v1169 = vmax.f32 %v1151, 0.0
      %v1170 = vpack.c.bf16 %v1155, %v1154
      %v1171 = vpack.c.bf16 %v1157, %v1156
      %v1172 = vpack.c.bf16 %v1159, %v1158
      %v1173 = vpack.c.bf16 %v1161, %v1160
      %v1174 = vpack.c.bf16 %v1163, %v1162
      %v1175 = vpack.c.bf16 %v1165, %v1164
      %v1176 = vpack.c.bf16 %v1167, %v1166
      %v1177 = vpack.c.bf16 %v1169, %v1168
      %v1178 = vld [vmem:[%s7] sm:$0xf]
      %v1179 = vld [vmem:[%s7 + $0x4] sm:$0xf]
      %v1180 = vld [vmem:[%s7 + $0x8] sm:$0xf]
      %v1181 = vld [vmem:[%s7 + $0xc] sm:$0xf]
      %v1182 = vld [vmem:[%s7 + $0x10] sm:$0xf]
      %v1183 = vld [vmem:[%s7 + $0x14] sm:$0xf]
      %v1184 = vld [vmem:[%s7 + $0x18] sm:$0xf]
      %v1185 = vld [vmem:[%s7 + $0x1c] sm:$0xf]
      %v1186 = vld [vmem:[%s7 + $0x20] sm:$0xf]
      %v1187 = vld [vmem:[%s7 + $0x24] sm:$0xf]
      %v1188 = vld [vmem:[%s7 + $0x28] sm:$0xf]
      %v1189 = vld [vmem:[%s7 + $0x2c] sm:$0xf]
      %v1190 = vld [vmem:[%s7 + $0x30] sm:$0xf]
      %v1191 = vld [vmem:[%s7 + $0x34] sm:$0xf]
      %v1192 = vld [vmem:[%s7 + $0x38] sm:$0xf]
      %v1193 = vld [vmem:[%s7 + $0x3c] sm:$0xf]
      %v1194 = vld [vmem:[%s8] sm:$0x1]
      %v1196 = vlaneseq
      %v1197 = vshrl.u32 %v1196, 7
      %v1198 = vsub.s32 0, %v1197
      %v1199 = vrot.slane %v1194, %v1198
      %v1217 = vunpack.c.l.b16 %v1178
      %v1218 = vunpack.c.l.b16 %v1179
      %v1219 = vunpack.c.l.b16 %v1180
      %v1220 = vunpack.c.l.b16 %v1181
      %v1221 = vunpack.c.l.b16 %v1182
      %v1222 = vunpack.c.l.b16 %v1183
      %v1223 = vunpack.c.l.b16 %v1184
      %v1224 = vunpack.c.l.b16 %v1185
      %v1225 = vunpack.c.l.b16 %v1186
      %v1226 = vunpack.c.l.b16 %v1187
      %v1227 = vunpack.c.l.b16 %v1188
      %v1228 = vunpack.c.l.b16 %v1189
      %v1229 = vunpack.c.l.b16 %v1190
      %v1230 = vunpack.c.l.b16 %v1191
      %v1231 = vunpack.c.l.b16 %v1192
      %v1232 = vunpack.c.l.b16 %v1193
      %v1233 = vpack.c.b16 %v1218, %v1217
      %v1234 = vpack.c.b16 %v1220, %v1219
      %v1235 = vpack.c.b16 %v1222, %v1221
      %v1236 = vpack.c.b16 %v1224, %v1223
      %v1237 = vpack.c.b16 %v1226, %v1225
      %v1238 = vpack.c.b16 %v1228, %v1227
      %v1239 = vpack.c.b16 %v1230, %v1229
      %v1240 = vpack.c.b16 %v1232, %v1231
      %1249 = vmatprep.subr.bf16.mxu0 0
      %1250 = vmatpush1.bf16.msra.mxu0 %v1240
      %1251 = vmatprep.subr.bf16.mxu0 0
      %1252 = vmatpush1.bf16.msra.mxu0 %v1239
      %1253 = vmatprep.subr.bf16.mxu0 0
      %1254 = vmatpush1.bf16.msra.mxu0 %v1238
      %1255 = vmatprep.subr.bf16.mxu0 0
      %1256 = vmatpush1.bf16.msra.mxu0 %v1237
      %1257 = vmatprep.subr.bf16.mxu0 0
      %1258 = vmatpush1.bf16.msra.mxu0 %v1236
      %1259 = vmatprep.subr.bf16.mxu0 0
      %1260 = vmatpush1.bf16.msra.mxu0 %v1235
      %1261 = vmatprep.subr.bf16.mxu0 0
      %1262 = vmatpush1.bf16.msra.mxu0 %v1234
      %1263 = vmatprep.subr.bf16.mxu0 0
      %1264 = vmatpush1.bf16.msra.mxu0 %v1233
      %1265 = vmatprep.subr.bf16.mxu0 0
      %1266 = vmatpush2.bf16.msra.mxu0 0
      %1267 = vmatprep.subr.bf16.mxu0 0
      %1268 = vmatpush2.bf16.msra.mxu0 0
      %1269 = vmatprep.subr.bf16.mxu0 0
      %1270 = vmatpush2.bf16.msra.mxu0 0
      %1271 = vmatprep.subr.bf16.mxu0 0
      %1272 = vmatpush2.bf16.msra.mxu0 0
      %1273 = vmatprep.subr.bf16.mxu0 0
      %1274 = vmatpush2.bf16.msra.mxu0 0
      %1275 = vmatprep.subr.bf16.mxu0 0
      %1276 = vmatpush2.bf16.msra.mxu0 0
      %1277 = vmatprep.subr.bf16.mxu0 0
      %1278 = vmatpush2.bf16.msra.mxu0 0
      %1279 = vmatprep.subr.bf16.mxu0 0
      %1280 = vmatpush2.bf16.msra.mxu0 0
      %1281 = vmatprep.mubr.bf16.mxu0 0
      %1282 = vmatmul.mubr.bf16.gmra.mxu0 %v1170
      %v1283 = vpop.f32.mrf.mxu0
      %v1284 = vadd.f32 %v1199, %v1283
      %v1285 = vpop.f32.mrf.mxu0
      %v1286 = vpop.f32.mrf.mxu0
      %v1287 = vadd.f32 %v1199, %v1286
      %v1288 = vpop.f32.mrf.mxu0
      %1289 = vmatprep.mubr.bf16.mxu0 0
      %1290 = vmatmul.mubr.bf16.gmra.mxu0 %v1171
      %v1291 = vpop.f32.mrf.mxu0
      %v1292 = vadd.f32 %v1199, %v1291
      %v1293 = vpop.f32.mrf.mxu0
      %v1294 = vpop.f32.mrf.mxu0
      %v1295 = vadd.f32 %v1199, %v1294
      %v1296 = vpop.f32.mrf.mxu0
      %1297 = vmatprep.mubr.bf16.mxu0 0
      %1298 = vmatmul.mubr.bf16.gmra.mxu0 %v1172
      %v1299 = vpop.f32.mrf.mxu0
      %v1300 = vadd.f32 %v1199, %v1299
      %v1301 = vpop.f32.mrf.mxu0
      %v1302 = vpop.f32.mrf.mxu0
      %v1303 = vadd.f32 %v1199, %v1302
      %v1304 = vpop.f32.mrf.mxu0
      %1305 = vmatprep.mubr.bf16.mxu0 0
      %1306 = vmatmul.mubr.bf16.gmra.mxu0 %v1173
      %v1307 = vpop.f32.mrf.mxu0
      %v1308 = vadd.f32 %v1199, %v1307
      %v1309 = vpop.f32.mrf.mxu0
      %v1310 = vpop.f32.mrf.mxu0
      %v1311 = vadd.f32 %v1199, %v1310
      %v1312 = vpop.f32.mrf.mxu0
      %1313 = vmatprep.mubr.bf16.mxu0 0
      %1314 = vmatmul.mubr.bf16.gmra.mxu0 %v1174
      %v1315 = vpop.f32.mrf.mxu0
      %v1316 = vadd.f32 %v1199, %v1315
      %v1317 = vpop.f32.mrf.mxu0
      %v1318 = vpop.f32.mrf.mxu0
      %v1319 = vadd.f32 %v1199, %v1318
      %v1320 = vpop.f32.mrf.mxu0
      %1321 = vmatprep.mubr.bf16.mxu0 0
      %1322 = vmatmul.mubr.bf16.gmra.mxu0 %v1175
      %v1323 = vpop.f32.mrf.mxu0
      %v1324 = vadd.f32 %v1199, %v1323
      %v1325 = vpop.f32.mrf.mxu0
      %v1326 = vpop.f32.mrf.mxu0
      %v1327 = vadd.f32 %v1199, %v1326
      %v1328 = vpop.f32.mrf.mxu0
      %1329 = vmatprep.mubr.bf16.mxu0 0
      %1330 = vmatmul.mubr.bf16.gmra.mxu0 %v1176
      %v1331 = vpop.f32.mrf.mxu0
      %v1332 = vadd.f32 %v1199, %v1331
      %v1333 = vpop.f32.mrf.mxu0
      %v1334 = vpop.f32.mrf.mxu0
      %v1335 = vadd.f32 %v1199, %v1334
      %v1336 = vpop.f32.mrf.mxu0
      %1337 = vmatprep.mubr.bf16.mxu0 0
      %1338 = vmatmul.mubr.bf16.gmra.mxu0 %v1177
      %v1339 = vpop.f32.mrf.mxu0
      %v1340 = vadd.f32 %v1199, %v1339
      %v1341 = vpop.f32.mrf.mxu0
      %v1342 = vpop.f32.mrf.mxu0
      %v1343 = vadd.f32 %v1199, %v1342
      %v1344 = vpop.f32.mrf.mxu0
      %1345 = vdwg.mxu0
      %vm1346 = vcmask 31744
      %v1347 = vsel %vm1346, %v1284, -inf
      %1348 = vmax.xlane.f32.xlu0 %v1347
      %v1349 = vpop.xlane.xlu0 %1348
      %v1350 = vsel %vm1346, %v1287, -inf
      %1351 = vmax.xlane.f32.xlu0 %v1350
      %v1352 = vpop.xlane.xlu0 %1351
      %v1353 = vsel %vm1346, %v1292, -inf
      %1354 = vmax.xlane.f32.xlu0 %v1353
      %v1355 = vpop.xlane.xlu0 %1354
      %v1356 = vsel %vm1346, %v1295, -inf
      %1357 = vmax.xlane.f32.xlu0 %v1356
      %v1358 = vpop.xlane.xlu0 %1357
      %v1359 = vsel %vm1346, %v1300, -inf
      %1360 = vmax.xlane.f32.xlu0 %v1359
      %v1361 = vpop.xlane.xlu0 %1360
      %v1362 = vsel %vm1346, %v1303, -inf
      %1363 = vmax.xlane.f32.xlu0 %v1362
      %v1364 = vpop.xlane.xlu0 %1363
      %v1365 = vsel %vm1346, %v1308, -inf
      %1366 = vmax.xlane.f32.xlu0 %v1365
      %v1367 = vpop.xlane.xlu0 %1366
      %v1368 = vsel %vm1346, %v1311, -inf
      %1369 = vmax.xlane.f32.xlu0 %v1368
      %v1370 = vpop.xlane.xlu0 %1369
      %v1371 = vsel %vm1346, %v1316, -inf
      %1372 = vmax.xlane.f32.xlu0 %v1371
      %v1373 = vpop.xlane.xlu0 %1372
      %v1374 = vsel %vm1346, %v1319, -inf
      %1375 = vmax.xlane.f32.xlu0 %v1374
      %v1376 = vpop.xlane.xlu0 %1375
      %v1377 = vsel %vm1346, %v1324, -inf
      %1378 = vmax.xlane.f32.xlu0 %v1377
      %v1379 = vpop.xlane.xlu0 %1378
      %v1380 = vsel %vm1346, %v1327, -inf
      %1381 = vmax.xlane.f32.xlu0 %v1380
      %v1382 = vpop.xlane.xlu0 %1381
      %v1383 = vsel %vm1346, %v1332, -inf
      %1384 = vmax.xlane.f32.xlu0 %v1383
      %v1385 = vpop.xlane.xlu0 %1384
      %v1386 = vsel %vm1346, %v1335, -inf
      %1387 = vmax.xlane.f32.xlu0 %v1386
      %v1388 = vpop.xlane.xlu0 %1387
      %v1389 = vsel %vm1346, %v1340, -inf
      %1390 = vmax.xlane.f32.xlu0 %v1389
      %v1391 = vpop.xlane.xlu0 %1390
      %v1392 = vsel %vm1346, %v1343, -inf
      %1393 = vmax.xlane.f32.xlu0 %v1392
      %v1394 = vpop.xlane.xlu0 %1393
      %v1395 = vsub.f32 %v1284, %v1349
      %v1396 = vsub.f32 %v1287, %v1352
      %v1397 = vsub.f32 %v1292, %v1355
      %v1398 = vsub.f32 %v1295, %v1358
      %v1399 = vsub.f32 %v1300, %v1361
      %v1400 = vsub.f32 %v1303, %v1364
      %v1401 = vsub.f32 %v1308, %v1367
      %v1402 = vsub.f32 %v1311, %v1370
      %v1403 = vsub.f32 %v1316, %v1373
      %v1404 = vsub.f32 %v1319, %v1376
      %v1405 = vsub.f32 %v1324, %v1379
      %v1406 = vsub.f32 %v1327, %v1382
      %v1407 = vsub.f32 %v1332, %v1385
      %v1408 = vsub.f32 %v1335, %v1388
      %v1409 = vsub.f32 %v1340, %v1391
      %v1410 = vsub.f32 %v1343, %v1394
      %v1411 = vmul.f32 %v1395, 1.442695
      %v1412 = vpow.pop %v1411
      %v1413 = vmul.f32 %v1396, 1.442695
      %v1414 = vpow.pop %v1413
      %v1415 = vmul.f32 %v1397, 1.442695
      %v1416 = vpow.pop %v1415
      %v1417 = vmul.f32 %v1398, 1.442695
      %v1418 = vpow.pop %v1417
      %v1419 = vmul.f32 %v1399, 1.442695
      %v1420 = vpow.pop %v1419
      %v1421 = vmul.f32 %v1400, 1.442695
      %v1422 = vpow.pop %v1421
      %v1423 = vmul.f32 %v1401, 1.442695
      %v1424 = vpow.pop %v1423
      %v1425 = vmul.f32 %v1402, 1.442695
      %v1426 = vpow.pop %v1425
      %v1427 = vmul.f32 %v1403, 1.442695
      %v1428 = vpow.pop %v1427
      %v1429 = vmul.f32 %v1404, 1.442695
      %v1430 = vpow.pop %v1429
      %v1431 = vmul.f32 %v1405, 1.442695
      %v1432 = vpow.pop %v1431
      %v1433 = vmul.f32 %v1406, 1.442695
      %v1434 = vpow.pop %v1433
      %v1435 = vmul.f32 %v1407, 1.442695
      %v1436 = vpow.pop %v1435
      %v1437 = vmul.f32 %v1408, 1.442695
      %v1438 = vpow.pop %v1437
      %v1439 = vmul.f32 %v1409, 1.442695
      %v1440 = vpow.pop %v1439
      %v1441 = vmul.f32 %v1410, 1.442695
      %v1442 = vpow.pop %v1441
      %v1443 = vsel %vm1346, %v1412, 0.0
      %1444 = vadd.xlane.f32.xlu0 %v1443
      %v1445 = vpop.xlane.xlu0 %1444
      %v1446 = vsel %vm1346, %v1414, 0.0
      %1447 = vadd.xlane.f32.xlu0 %v1446
      %v1448 = vpop.xlane.xlu0 %1447
      %v1449 = vsel %vm1346, %v1416, 0.0
      %1450 = vadd.xlane.f32.xlu0 %v1449
      %v1451 = vpop.xlane.xlu0 %1450
      %v1452 = vsel %vm1346, %v1418, 0.0
      %1453 = vadd.xlane.f32.xlu0 %v1452
      %v1454 = vpop.xlane.xlu0 %1453
      %v1455 = vsel %vm1346, %v1420, 0.0
      %1456 = vadd.xlane.f32.xlu0 %v1455
      %v1457 = vpop.xlane.xlu0 %1456
      %v1458 = vsel %vm1346, %v1422, 0.0
      %1459 = vadd.xlane.f32.xlu0 %v1458
      %v1460 = vpop.xlane.xlu0 %1459
      %v1461 = vsel %vm1346, %v1424, 0.0
      %1462 = vadd.xlane.f32.xlu0 %v1461
      %v1463 = vpop.xlane.xlu0 %1462
      %v1464 = vsel %vm1346, %v1426, 0.0
      %1465 = vadd.xlane.f32.xlu0 %v1464
      %v1466 = vpop.xlane.xlu0 %1465
      %v1467 = vsel %vm1346, %v1428, 0.0
      %1468 = vadd.xlane.f32.xlu0 %v1467
      %v1469 = vpop.xlane.xlu0 %1468
      %v1470 = vsel %vm1346, %v1430, 0.0
      %1471 = vadd.xlane.f32.xlu0 %v1470
      %v1472 = vpop.xlane.xlu0 %1471
      %v1473 = vsel %vm1346, %v1432, 0.0
      %1474 = vadd.xlane.f32.xlu0 %v1473
      %v1475 = vpop.xlane.xlu0 %1474
      %v1476 = vsel %vm1346, %v1434, 0.0
      %1477 = vadd.xlane.f32.xlu0 %v1476
      %v1478 = vpop.xlane.xlu0 %1477
      %v1479 = vsel %vm1346, %v1436, 0.0
      %1480 = vadd.xlane.f32.xlu0 %v1479
      %v1481 = vpop.xlane.xlu0 %1480
      %v1482 = vsel %vm1346, %v1438, 0.0
      %1483 = vadd.xlane.f32.xlu0 %v1482
      %v1484 = vpop.xlane.xlu0 %1483
      %v1485 = vsel %vm1346, %v1440, 0.0
      %1486 = vadd.xlane.f32.xlu0 %v1485
      %v1487 = vpop.xlane.xlu0 %1486
      %v1488 = vsel %vm1346, %v1442, 0.0
      %1489 = vadd.xlane.f32.xlu0 %v1488
      %v1490 = vpop.xlane.xlu0 %1489
      %v1491 = vrcp.pop %v1445
      %v1492 = vmul.f32 %v1412, %v1491
      %v1493 = vrcp.pop %v1448
      %v1494 = vmul.f32 %v1414, %v1493
      %v1495 = vrcp.pop %v1451
      %v1496 = vmul.f32 %v1416, %v1495
      %v1497 = vrcp.pop %v1454
      %v1498 = vmul.f32 %v1418, %v1497
      %v1499 = vrcp.pop %v1457
      %v1500 = vmul.f32 %v1420, %v1499
      %v1501 = vrcp.pop %v1460
      %v1502 = vmul.f32 %v1422, %v1501
      %v1503 = vrcp.pop %v1463
      %v1504 = vmul.f32 %v1424, %v1503
      %v1505 = vrcp.pop %v1466
      %v1506 = vmul.f32 %v1426, %v1505
      %v1507 = vrcp.pop %v1469
      %v1508 = vmul.f32 %v1428, %v1507
      %v1509 = vrcp.pop %v1472
      %v1510 = vmul.f32 %v1430, %v1509
      %v1511 = vrcp.pop %v1475
      %v1512 = vmul.f32 %v1432, %v1511
      %v1513 = vrcp.pop %v1478
      %v1514 = vmul.f32 %v1434, %v1513
      %v1515 = vrcp.pop %v1481
      %v1516 = vmul.f32 %v1436, %v1515
      %v1517 = vrcp.pop %v1484
      %v1518 = vmul.f32 %v1438, %v1517
      %v1519 = vrcp.pop %v1487
      %v1520 = vmul.f32 %v1440, %v1519
      %v1521 = vrcp.pop %v1490
      %v1522 = vmul.f32 %v1442, %v1521
      %1523 = vst.msk [vmem:[%s334] sm:$0xff] %vm1346, %v1492
      %1524 = vst.msk [vmem:[%s334 + $0x8] sm:$0xff] %vm1346, %v1494
      %1525 = vst.msk [vmem:[%s334 + $0x10] sm:$0xff] %vm1346, %v1496
      %1526 = vst.msk [vmem:[%s334 + $0x18] sm:$0xff] %vm1346, %v1498
      %1527 = vst.msk [vmem:[%s334 + $0x20] sm:$0xff] %vm1346, %v1500
      %1528 = vst.msk [vmem:[%s334 + $0x28] sm:$0xff] %vm1346, %v1502
      %1529 = vst.msk [vmem:[%s334 + $0x30] sm:$0xff] %vm1346, %v1504
      %1530 = vst.msk [vmem:[%s334 + $0x38] sm:$0xff] %vm1346, %v1506
      %1531 = vst.msk [vmem:[%s334 + $0x40] sm:$0xff] %vm1346, %v1508
      %1532 = vst.msk [vmem:[%s334 + $0x48] sm:$0xff] %vm1346, %v1510
      %1533 = vst.msk [vmem:[%s334 + $0x50] sm:$0xff] %vm1346, %v1512
      %1534 = vst.msk [vmem:[%s334 + $0x58] sm:$0xff] %vm1346, %v1514
      %1535 = vst.msk [vmem:[%s334 + $0x60] sm:$0xff] %vm1346, %v1516
      %1536 = vst.msk [vmem:[%s334 + $0x68] sm:$0xff] %vm1346, %v1518
      %1537 = vst.msk [vmem:[%s334 + $0x70] sm:$0xff] %vm1346, %v1520
      %1538 = vst.msk [vmem:[%s334 + $0x78] sm:$0xff] %vm1346, %v1522
      %s1539 = smul.u32 16, %s20
      %p1540 = scmp.lt.s32.totalorder %s1539, 31
      %s1541 = scalar_select %p1540, %s1539, 31
      %s1542 = smul.addr %s1541, 8
      %s1543 = scalar_lea.vmem %s9, %s1542
      // Predicated region
      $region57: #{tpu_custom_call.1} parent=55 // pred_check
        %p1544 = pneg %p232
      $region58: #{tpu_custom_call.1} parent=55 // pred_check_branch
        %1546 = sbr.rel (%p1544) target = $region60
      $region59: #{tpu_custom_call.1} parent=55 // pred_region
        %s1547 = smul.u32 16, %s20
      $region60: #{tpu_custom_call.1} parent=55 // pred_fallthru
        _
    $region56: #{tpu_custom_call.1} parent=5 // pred_fallthru
      _
    %p1548 = scmp.le.s32.totalorder 2, %s15
    // Predicated region
    $region61: #{tpu_custom_call.1} parent=5 // pred_check
      %p1549 = pneg %p1548
    $region62: #{tpu_custom_call.1} parent=5 // pred_check_branch
      %1551 = sbr.rel (%p1549) target = $region64
    $region63: #{tpu_custom_call.1} parent=5 // pred_region
      %s1552 = ssub.s32 %s15, 2
      // Predicated region
      $region65: #{tpu_custom_call.1} parent=63 // pred_check
        %p1553 = pneg %p238
      $region66: #{tpu_custom_call.1} parent=63 // pred_check_branch
        %1555 = sbr.rel (%p1553) target = $region68
      $region67: #{tpu_custom_call.1} parent=63 // pred_region
        %s1556 = smul.u32 16, %s21
        %p1557 = scmp.lt.s32.totalorder %s1556, 31
        %s1558 = scalar_select %p1557, %s1556, 31
        %s1559 = smul.addr %s1558, 8
        %s1560 = scalar_lea.vmem %s9, %s1559
      $region68: #{tpu_custom_call.1} parent=63 // pred_fallthru
        _
    $region64: #{tpu_custom_call.1} parent=5 // pred_fallthru
      _
  $region6: #{tpu_custom_call.1} parent=0 // loop_footer
    %s19 = sadd.s32 1, %s15
  $region7: #{tpu_custom_call.1} parent=0 // loop_footer_branch
    %14 = sbr.rel target = $region3
  $region8: #{tpu_custom_call.1} parent=0 // loop_exit
    _

</llo_original>
